<compile_context>
chip_gen: v6e
topology: v6e:2x2x1
jax: 0.10.0
libtpu: 0.0.40
codegen_flags: <defaults>
</compile_context>

<pallas_src>
import functools

import jax
import jax.numpy as jnp
from jax.experimental import pallas as pl
from jax.experimental.pallas import tpu as pltpu

LANE = 128


def _round_up(x, m):
    return ((x + m - 1) // m) * m


def dqn_kernel(x_ref,
               w1_ref, b1_ref,
               w2_ref, b2_ref,
               w3_ref, b3_ref,
               w4_ref, b4_ref,
               out_ref):
    # fc1: f32 x f32 (state features kept full precision), f32 bias + ReLU,
    # then cast the hidden activations to bf16 for the remaining MXU layers.
    h = jnp.dot(x_ref[...], w1_ref[...], preferred_element_type=jnp.float32)
    h = jnp.maximum(h + b1_ref[...], 0.0).astype(jnp.bfloat16)
    # fc2: bf16 matmul operands, f32 MXU accumulation.
    h = jnp.dot(h, w2_ref[...], preferred_element_type=jnp.float32)
    h = jnp.maximum(h + b2_ref[...], 0.0).astype(jnp.bfloat16)
    # fc3
    h = jnp.dot(h, w3_ref[...], preferred_element_type=jnp.float32)
    h = jnp.maximum(h + b3_ref[...], 0.0).astype(jnp.bfloat16)
    # out (no activation): bias added to the f32 accumulator, stored bf16
    # (lane-dense, halves the padded output writeback stream).
    y = jnp.dot(h, w4_ref[...], preferred_element_type=jnp.float32)
    out_ref[...] = (y + b4_ref[...]).astype(out_ref.dtype)


def prepare_params(params):
    """One-time prep: pad + cast weights so the per-call wrapper does no weight work.

    params: dict of f32 arrays, w_i shaped (in, out), b_i shaped (1, out).
    Returns a dict of device arrays ready for dqn_forward.
    """
    state_size = params["w1"].shape[0]
    action_size = params["w4"].shape[1]
    state_pad = _round_up(max(state_size, LANE), LANE)
    act_pad = _round_up(max(action_size, LANE), LANE)

    # Layer 1 stays f32 for fidelity to the f32 PyTorch module; pad its input
    # dim with zero rows to match the lane-padded x.
    w1 = params["w1"].astype(jnp.float32)
    if state_pad != state_size:
        w1 = jnp.pad(w1, ((0, state_pad - state_size), (0, 0)))

    # Final layer: pad output dim to a 128-lane multiple for unmasked stores.
    w4 = params["w4"].astype(jnp.bfloat16)
    b4 = params["b4"].astype(jnp.float32)
    if act_pad != action_size:
        w4 = jnp.pad(w4, ((0, 0), (0, act_pad - action_size)))
        b4 = jnp.pad(b4, ((0, 0), (0, act_pad - action_size)))

    return {
        "w1": w1, "b1": params["b1"].astype(jnp.float32),
        "w2": params["w2"].astype(jnp.bfloat16), "b2": params["b2"].astype(jnp.float32),
        "w3": params["w3"].astype(jnp.bfloat16), "b3": params["b3"].astype(jnp.float32),
        "w4": w4, "b4": b4,
    }


@functools.partial(jax.jit, static_argnames=("action_size", "tile_b"))
def dqn_forward(x, prepared, *, action_size, tile_b=None):
    """x: (B, state_size) float32.  prepared: output of prepare_params()."""
    B, state_size = x.shape
    state_pad = prepared["w1"].shape[0]
    act_pad = prepared["w4"].shape[1]

    if tile_b is None:
        # >=256 fills the 256-row MXU (v6e/v7x) and amortizes per-step overhead;
        # small inference batches stay at one 128-row tile.  On v7x, callers
        # with B >= 512 may prefer tile_b such that B/tile_b >= 2 so both
        # TensorCores get parallel grid steps (the default 256 does this).
        tile_b = 256 if B > 128 else 128

    # Pad batch to a tile multiple and the feature dim to 128 lanes (f32 kept).
    Bp = _round_up(B, tile_b)
    xp = jnp.pad(x.astype(jnp.float32),
                 ((0, Bp - B), (0, state_pad - state_size)))

    # Weights/biases: full-array blocks with constant index_map -> fetched once
    # and VMEM-resident across all batch-grid steps.
    def resident(a):
        return pl.BlockSpec(a.shape, lambda i: (0,) * a.ndim)

    out = pl.pallas_call(
        dqn_kernel,
        out_shape=jax.ShapeDtypeStruct((Bp, act_pad), jnp.bfloat16),
        grid=(Bp // tile_b,),
        in_specs=[
            pl.BlockSpec((tile_b, state_pad), lambda i: (i, 0)),  # x: batch-tiled
            resident(prepared["w1"]), resident(prepared["b1"]),
            resident(prepared["w2"]), resident(prepared["b2"]),
            resident(prepared["w3"]), resident(prepared["b3"]),
            resident(prepared["w4"]), resident(prepared["b4"]),
        ],
        out_specs=pl.BlockSpec((tile_b, act_pad), lambda i: (i, 0)),
        compiler_params=pltpu.CompilerParams(
            dimension_semantics=("parallel",),  # megacore-shardable batch axis
        ),
    )(xp,
      prepared["w1"], prepared["b1"],
      prepared["w2"], prepared["b2"],
      prepared["w3"], prepared["b3"],
      prepared["w4"], prepared["b4"])

    return out[:B, :action_size].astype(jnp.float32)


def init_params(key, state_size, action_size):
    """Deterministic init (Kaiming-uniform-ish, like nn.Linear defaults)."""
    dims = [(state_size, 512), (512, 256), (256, 128), (128, action_size)]
    params = {}
    for i, (fan_in, fan_out) in enumerate(dims, start=1):
        key, kw, kb = jax.random.split(key, 3)
        bound = 1.0 / (fan_in ** 0.5)
        params[f"w{i}"] = jax.random.uniform(
            kw, (fan_in, fan_out), jnp.float32, -bound, bound)
        params[f"b{i}"] = jax.random.uniform(
            kb, (1, fan_out), jnp.float32, -bound, bound)
    return params


def dqn_reference(x, params):
    """Pure-JAX reference mirroring the kernel numerics (f32 layer 1, bf16 layers 2-4)."""
    def mm_bf16(a, w):
        return jnp.dot(a.astype(jnp.bfloat16), w.astype(jnp.bfloat16),
                       preferred_element_type=jnp.float32)
    h = jnp.maximum(
        jnp.dot(x, params["w1"], preferred_element_type=jnp.float32) + params["b1"], 0.0)
    h = jnp.maximum(mm_bf16(h, params["w2"]) + params["b2"], 0.0)
    h = jnp.maximum(mm_bf16(h, params["w3"]) + params["b3"], 0.0)
    return mm_bf16(h, params["w4"]) + params["b4"]


if __name__ == "__main__":
    key = jax.random.PRNGKey(0)
    k_params, k_x = jax.random.split(key)

    batch = 300          # pads to 512 -> two 256-row tiles, exercises batch pad + grid
    state_size = 32
    action_size = 8

    params = init_params(k_params, state_size, action_size)
    prepared = prepare_params(params)          # one-time: pad + cast weights
    x = jax.random.normal(k_x, (batch, state_size), jnp.float32)

    out = jax.block_until_ready(dqn_forward(x, prepared, action_size=action_size))
    ref = dqn_reference(x, params)

    assert out.shape == (batch, action_size)
    # Kernel output passes through a bf16 store; relaxed tolerance covers that.
    assert jnp.allclose(out, ref, atol=2e-2, rtol=2e-2), "mismatch vs reference"

    print("KERNEL_OK")
</pallas_src>

<mosaic_0001>
module attributes {stable_mosaic.version = 11 : i64} {
  func.func @dqn_kernel(%arg0: i32, %arg1: memref<256x128xf32, #tpu.memory_space<vmem>>, %arg2: memref<128x512xf32, #tpu.memory_space<vmem>>, %arg3: memref<1x512xf32, #tpu.memory_space<vmem>>, %arg4: memref<512x256xbf16, #tpu.memory_space<vmem>>, %arg5: memref<1x256xf32, #tpu.memory_space<vmem>>, %arg6: memref<256x128xbf16, #tpu.memory_space<vmem>>, %arg7: memref<1x128xf32, #tpu.memory_space<vmem>>, %arg8: memref<128x128xbf16, #tpu.memory_space<vmem>>, %arg9: memref<1x128xf32, #tpu.memory_space<vmem>>, %arg10: memref<256x128xbf16, #tpu.memory_space<vmem>>) attributes {dimension_semantics = [#tpu.dimension_semantics<parallel>], iteration_bounds = array<i64: 2>, scalar_prefetch = 0 : i64, scratch_operands = 0 : i64, tpu.core_type = #tpu.core_type<tc>, window_params = [{transform_indices = @transform_0, window_bounds = array<i64: 256, 128>}, {pipeline_mode = #tpu.pipeline_mode<synchronous>, transform_indices = @transform_1, window_bounds = array<i64: 128, 512>}, {pipeline_mode = #tpu.pipeline_mode<synchronous>, transform_indices = @transform_2, window_bounds = array<i64: 1, 512>}, {pipeline_mode = #tpu.pipeline_mode<synchronous>, transform_indices = @transform_3, window_bounds = array<i64: 512, 256>}, {pipeline_mode = #tpu.pipeline_mode<synchronous>, transform_indices = @transform_4, window_bounds = array<i64: 1, 256>}, {pipeline_mode = #tpu.pipeline_mode<synchronous>, transform_indices = @transform_5, window_bounds = array<i64: 256, 128>}, {pipeline_mode = #tpu.pipeline_mode<synchronous>, transform_indices = @transform_6, window_bounds = array<i64: 1, 128>}, {pipeline_mode = #tpu.pipeline_mode<synchronous>, transform_indices = @transform_7, window_bounds = array<i64: 128, 128>}, {pipeline_mode = #tpu.pipeline_mode<synchronous>, transform_indices = @transform_8, window_bounds = array<i64: 1, 128>}, {transform_indices = @transform_9, window_bounds = array<i64: 256, 128>}]} {
    %c0 = arith.constant 0 : index
    %c0_0 = arith.constant 0 : index
    %0 = vector.load %arg1[%c0, %c0_0] : memref<256x128xf32, #tpu.memory_space<vmem>>, vector<256x128xf32>
    %c0_1 = arith.constant 0 : index
    %c0_2 = arith.constant 0 : index
    %1 = vector.load %arg2[%c0_1, %c0_2] : memref<128x512xf32, #tpu.memory_space<vmem>>, vector<128x512xf32>
    %cst = arith.constant dense<0.000000e+00> : vector<256x512xf32>
    %2 = tpu.matmul %0, %1, %cst {dimension_numbers = #tpu.dot_dimension_numbers<[1], [0], [0], [1], [0, 0, 1, 1], [], []>} : vector<256x128xf32>, vector<128x512xf32>, vector<256x512xf32> -> vector<256x512xf32>
    %c0_3 = arith.constant 0 : index
    %c0_4 = arith.constant 0 : index
    %3 = vector.load %arg3[%c0_3, %c0_4] : memref<1x512xf32, #tpu.memory_space<vmem>>, vector<1x512xf32>
    %4 = vector.broadcast %3 : vector<1x512xf32> to vector<256x512xf32>
    %5 = arith.addf %2, %4 : vector<256x512xf32>
    %cst_5 = arith.constant 0.000000e+00 : f32
    %6 = vector.broadcast %cst_5 : f32 to vector<256x512xf32>
    %7 = arith.maximumf %5, %6 : vector<256x512xf32>
    %8 = arith.truncf %7 : vector<256x512xf32> to vector<256x512xbf16>
    %c0_6 = arith.constant 0 : index
    %c0_7 = arith.constant 0 : index
    %9 = vector.load %arg4[%c0_6, %c0_7] : memref<512x256xbf16, #tpu.memory_space<vmem>>, vector<512x256xbf16>
    %cst_8 = arith.constant dense<0.000000e+00> : vector<256x256xf32>
    %10 = tpu.matmul %8, %9, %cst_8 {dimension_numbers = #tpu.dot_dimension_numbers<[1], [0], [0], [1], [0, 0, 1, 1], [], []>} : vector<256x512xbf16>, vector<512x256xbf16>, vector<256x256xf32> -> vector<256x256xf32>
    %c0_9 = arith.constant 0 : index
    %c0_10 = arith.constant 0 : index
    %11 = vector.load %arg5[%c0_9, %c0_10] : memref<1x256xf32, #tpu.memory_space<vmem>>, vector<1x256xf32>
    %12 = vector.broadcast %11 : vector<1x256xf32> to vector<256x256xf32>
    %13 = arith.addf %10, %12 : vector<256x256xf32>
    %cst_11 = arith.constant 0.000000e+00 : f32
    %14 = vector.broadcast %cst_11 : f32 to vector<256x256xf32>
    %15 = arith.maximumf %13, %14 : vector<256x256xf32>
    %16 = arith.truncf %15 : vector<256x256xf32> to vector<256x256xbf16>
    %c0_12 = arith.constant 0 : index
    %c0_13 = arith.constant 0 : index
    %17 = vector.load %arg6[%c0_12, %c0_13] : memref<256x128xbf16, #tpu.memory_space<vmem>>, vector<256x128xbf16>
    %cst_14 = arith.constant dense<0.000000e+00> : vector<256x128xf32>
    %18 = tpu.matmul %16, %17, %cst_14 {dimension_numbers = #tpu.dot_dimension_numbers<[1], [0], [0], [1], [0, 0, 1, 1], [], []>} : vector<256x256xbf16>, vector<256x128xbf16>, vector<256x128xf32> -> vector<256x128xf32>
    %c0_15 = arith.constant 0 : index
    %c0_16 = arith.constant 0 : index
    %19 = vector.load %arg7[%c0_15, %c0_16] : memref<1x128xf32, #tpu.memory_space<vmem>>, vector<1x128xf32>
    %20 = vector.broadcast %19 : vector<1x128xf32> to vector<256x128xf32>
    %21 = arith.addf %18, %20 : vector<256x128xf32>
    %cst_17 = arith.constant 0.000000e+00 : f32
    %22 = vector.broadcast %cst_17 : f32 to vector<256x128xf32>
    %23 = arith.maximumf %21, %22 : vector<256x128xf32>
    %24 = arith.truncf %23 : vector<256x128xf32> to vector<256x128xbf16>
    %c0_18 = arith.constant 0 : index
    %c0_19 = arith.constant 0 : index
    %25 = vector.load %arg8[%c0_18, %c0_19] : memref<128x128xbf16, #tpu.memory_space<vmem>>, vector<128x128xbf16>
    %cst_20 = arith.constant dense<0.000000e+00> : vector<256x128xf32>
    %26 = tpu.matmul %24, %25, %cst_20 {dimension_numbers = #tpu.dot_dimension_numbers<[1], [0], [0], [1], [0, 0, 1, 1], [], []>} : vector<256x128xbf16>, vector<128x128xbf16>, vector<256x128xf32> -> vector<256x128xf32>
    %c0_21 = arith.constant 0 : index
    %c0_22 = arith.constant 0 : index
    %27 = vector.load %arg9[%c0_21, %c0_22] : memref<1x128xf32, #tpu.memory_space<vmem>>, vector<1x128xf32>
    %28 = vector.broadcast %27 : vector<1x128xf32> to vector<256x128xf32>
    %29 = arith.addf %26, %28 : vector<256x128xf32>
    %30 = arith.truncf %29 : vector<256x128xf32> to vector<256x128xbf16>
    %c0_23 = arith.constant 0 : index
    %c0_24 = arith.constant 0 : index
    %31 = vector.load %arg10[%c0_23, %c0_24] : memref<256x128xbf16, #tpu.memory_space<vmem>>, vector<256x128xbf16>
    tpu.vector_store %arg10[%c0_23, %c0_24], %30 {strides = array<i32>} : memref<256x128xbf16, #tpu.memory_space<vmem>>, vector<256x128xbf16>,
    return
  }
  func.func @transform_0(%arg0: i32) -> (i32, i32) {
    %c0_i32 = arith.constant 0 : i32
    %c0_i32_0 = arith.constant 0 : i32
    return %arg0, %c0_i32 : i32, i32
  }
  func.func @transform_1(%arg0: i32) -> (i32, i32) {
    %c0_i32 = arith.constant 0 : i32
    %c0_i32_0 = arith.constant 0 : i32
    %c0_i32_1 = arith.constant 0 : i32
    return %c0_i32, %c0_i32_0 : i32, i32
  }
  func.func @transform_2(%arg0: i32) -> (i32, i32) {
    %c0_i32 = arith.constant 0 : i32
    %c0_i32_0 = arith.constant 0 : i32
    %c0_i32_1 = arith.constant 0 : i32
    return %c0_i32, %c0_i32_0 : i32, i32
  }
  func.func @transform_3(%arg0: i32) -> (i32, i32) {
    %c0_i32 = arith.constant 0 : i32
    %c0_i32_0 = arith.constant 0 : i32
    %c0_i32_1 = arith.constant 0 : i32
    return %c0_i32, %c0_i32_0 : i32, i32
  }
  func.func @transform_4(%arg0: i32) -> (i32, i32) {
    %c0_i32 = arith.constant 0 : i32
    %c0_i32_0 = arith.constant 0 : i32
    %c0_i32_1 = arith.constant 0 : i32
    return %c0_i32, %c0_i32_0 : i32, i32
  }
  func.func @transform_5(%arg0: i32) -> (i32, i32) {
    %c0_i32 = arith.constant 0 : i32
    %c0_i32_0 = arith.constant 0 : i32
    %c0_i32_1 = arith.constant 0 : i32
    return %c0_i32, %c0_i32_0 : i32, i32
  }
  func.func @transform_6(%arg0: i32) -> (i32, i32) {
    %c0_i32 = arith.constant 0 : i32
    %c0_i32_0 = arith.constant 0 : i32
    %c0_i32_1 = arith.constant 0 : i32
    return %c0_i32, %c0_i32_0 : i32, i32
  }
  func.func @transform_7(%arg0: i32) -> (i32, i32) {
    %c0_i32 = arith.constant 0 : i32
    %c0_i32_0 = arith.constant 0 : i32
    %c0_i32_1 = arith.constant 0 : i32
    return %c0_i32, %c0_i32_0 : i32, i32
  }
  func.func @transform_8(%arg0: i32) -> (i32, i32) {
    %c0_i32 = arith.constant 0 : i32
    %c0_i32_0 = arith.constant 0 : i32
    %c0_i32_1 = arith.constant 0 : i32
    return %c0_i32, %c0_i32_0 : i32, i32
  }
  func.func @transform_9(%arg0: i32) -> (i32, i32) {
    %c0_i32 = arith.constant 0 : i32
    %c0_i32_0 = arith.constant 0 : i32
    return %arg0, %c0_i32 : i32, i32
  }
}

</mosaic_0001>

<llo_original>
// kernel: dqn_forward.1
$region0: #{dqn_forward.1}
  #allocation0 [shape = 'u32[]', space=smem, size = 0x4, offset = 0x4, fixed_abs, tag = 'smem constant byte address 0x4 - core index']
  #allocation1 [shape = 'u32[144,128]{1,0:T(1,128)}', space=vmem, size = 0x12000, scoped, tag = 'internal scratch']
  %s0 = inlined_call_operand.vmem [shape: f32[512,128], index: 0, kind: input, shape index: {}]
  %s1 = inlined_call_operand.vmem [shape: f32[128,512], index: 1, kind: input, shape index: {}]
  %s2 = inlined_call_operand.hbm [shape: f32[1,512], index: 2, kind: input, shape index: {}]
  %s3 = inlined_call_operand.vmem [shape: bf16[512,256], index: 3, kind: input, shape index: {}]
  %s4 = inlined_call_operand.hbm [shape: f32[1,256], index: 4, kind: input, shape index: {}]
  %s5 = inlined_call_operand.vmem [shape: bf16[256,128], index: 5, kind: input, shape index: {}]
  %s6 = inlined_call_operand.vmem [shape: f32[1,128], index: 6, kind: input, shape index: {}]
  %s7 = inlined_call_operand.vmem [shape: bf16[128,128], index: 7, kind: input, shape index: {}]
  %s8 = inlined_call_operand.hbm [shape: f32[1,128], index: 8, kind: input, shape index: {}]
  %s9 = inlined_call_operand.vmem [shape: bf16[512,128], index: 9, kind: output, shape index: {}]
  %s10 = sld [smem:[#allocation0]]
  $region81: #{dqn_forward.1} parent=0
    _
  %s12 = ssub.s32 1, %s10
  %s13 = scalar_select 0, %s12, %s10
  $region1: #{dqn_forward.1} parent=0
    #allocation2 [shape = 'u8[2048]{0}', space=vmem, size = 0x800, scoped, tag = 'input window, operand 2, single buffered']
    #allocation3 [shape = 's32[2]{0}', space=sflag, size = 0x8, scoped, tag = 'scoped memory for dqn_forward.1']
    #allocation4 [shape = 'u8[1024]{0}', space=vmem, size = 0x400, scoped, tag = 'input window, operand 4, single buffered']
    #allocation5 [shape = 's32[1]{0}', space=sflag, size = 0x4, scoped, tag = 'scoped memory for dqn_forward.1']
    #allocation6 [shape = 'u8[512]{0}', space=vmem, size = 0x400, scoped, tag = 'input window, operand 8, single buffered']
    %14 = vsyncpa [#allocation3], 0
    %15 = vsyncpa [#allocation5], 0
    loop: start=0, step=1, limit=4
    $region2: #{dqn_forward.1} parent=1 // loop_pre_header
      _
    $region3: #{dqn_forward.1} parent=1 // loop_header
      %s17 = sphi 0, %s21
      %p18 = scmp.ge.s32.totalorder %s17, 4
      %s27 = sphi 0, %s29
      %s30 = sphi 0, %s27
      %s31 = sphi 0, %s30
      %s47 = sphi 0, %s31
      %s51 = sphi 0, %s51
      %s53 = sphi 0, %s51
      %s54 = sphi 0, %s53
      %s68 = sphi 0, %s54
      %s72 = sphi 0, %s72
      %s74 = sphi 0, %s72
      %s75 = sphi 0, %s74
      %s89 = sphi 0, %s75
      %s93 = sphi 0, %s93
      %s95 = sphi 0, %s93
      %s96 = sphi 0, %s95
      %s110 = sphi 0, %s96
      %s114 = sphi 0, %s114
      %s116 = sphi 0, %s114
      %s117 = sphi 0, %s116
      %s131 = sphi 0, %s117
      %s135 = sphi 0, %s135
      %s137 = sphi 0, %s135
      %s138 = sphi 0, %s137
      %s152 = sphi 0, %s138
      %s156 = sphi 0, %s156
      %s158 = sphi 0, %s156
      %s159 = sphi 0, %s158
      %s173 = sphi 0, %s159
      %s177 = sphi 0, %s177
      %s179 = sphi 0, %s177
      %s180 = sphi 0, %s179
      %s194 = sphi 0, %s180
      %s198 = sphi 0, %s198
      %s200 = sphi 0, %s198
      %s201 = sphi 0, %s200
      %s215 = sphi 0, %s201
      %s221 = sphi 0, %s223
      %s224 = sphi 0, %s221
      %s225 = sphi 0, %s224
      %s241 = sphi 0, %s225
    $region4: #{dqn_forward.1} parent=1 // loop_header_branch
      %20 = sbr.rel (%p18) target = $region8
    $region5: #{dqn_forward.1} parent=1 // loop_body
      %s22 = ssub.s32 %s17, 1
      %s23 = ssub.s32 %s17, 2
      %s24 = sadd.s32 %s17, 1
      %s25 = ssub.s32 %s17, %s24
      %p26 = scmp.eq.s32.totalorder %s25, 0
      %s28 = sadd.s32 %s27, 1
      %s29 = scalar_select %p26, %s27, %s28
      %p32 = pneg %p26
      %p33 = scmp.eq.s32.totalorder %s17, 1
      %p34 = por %p32, %p33
      %p35 = scmp.ne.s32.totalorder %s27, %s30
      %p36 = scmp.eq.s32.totalorder %s17, 0
      %p37 = por %p35, %p36
      %p38 = scmp.ne.s32.totalorder %s27, %s30
      %p39 = scmp.eq.s32.totalorder %s22, 1
      %p40 = por %p38, %p39
      %p41 = scmp.ne.s32.totalorder %s30, %s31
      %p42 = scmp.eq.s32.totalorder %s22, 0
      %p43 = por %p41, %p42
      %p44 = scmp.ne.s32.totalorder %s30, %s31
      %p45 = scmp.eq.s32.totalorder %s23, 1
      %p46 = por %p44, %p45
      %p48 = scmp.ne.s32.totalorder %s31, %s47
      %p49 = scmp.eq.s32.totalorder %s23, 0
      %p50 = por %p48, %p49
      %s52 = sadd.s32 %s51, 1
      %p55 = scmp.eq.s32.totalorder %s17, 1
      %p56 = scmp.ne.s32.totalorder %s51, %s53
      %p57 = scmp.eq.s32.totalorder %s17, 0
      %p58 = por %p56, %p57
      %p59 = scmp.ne.s32.totalorder %s51, %s53
      %p60 = scmp.eq.s32.totalorder %s22, 1
      %p61 = por %p59, %p60
      %p62 = scmp.ne.s32.totalorder %s53, %s54
      %p63 = scmp.eq.s32.totalorder %s22, 0
      %p64 = por %p62, %p63
      %p65 = scmp.ne.s32.totalorder %s53, %s54
      %p66 = scmp.eq.s32.totalorder %s23, 1
      %p67 = por %p65, %p66
      %p69 = scmp.ne.s32.totalorder %s54, %s68
      %p70 = scmp.eq.s32.totalorder %s23, 0
      %p71 = por %p69, %p70
      %s73 = sadd.s32 %s72, 1
      %p76 = scmp.eq.s32.totalorder %s17, 1
      %p77 = scmp.ne.s32.totalorder %s72, %s74
      %p78 = scmp.eq.s32.totalorder %s17, 0
      %p79 = por %p77, %p78
      %p80 = scmp.ne.s32.totalorder %s72, %s74
      %p81 = scmp.eq.s32.totalorder %s22, 1
      %p82 = por %p80, %p81
      %p83 = scmp.ne.s32.totalorder %s74, %s75
      %p84 = scmp.eq.s32.totalorder %s22, 0
      %p85 = por %p83, %p84
      %p86 = scmp.ne.s32.totalorder %s74, %s75
      %p87 = scmp.eq.s32.totalorder %s23, 1
      %p88 = por %p86, %p87
      %p90 = scmp.ne.s32.totalorder %s75, %s89
      %p91 = scmp.eq.s32.totalorder %s23, 0
      %p92 = por %p90, %p91
      %s94 = sadd.s32 %s93, 1
      %p97 = scmp.eq.s32.totalorder %s17, 1
      %p98 = scmp.ne.s32.totalorder %s93, %s95
      %p99 = scmp.eq.s32.totalorder %s17, 0
      %p100 = por %p98, %p99
      %p101 = scmp.ne.s32.totalorder %s93, %s95
      %p102 = scmp.eq.s32.totalorder %s22, 1
      %p103 = por %p101, %p102
      %p104 = scmp.ne.s32.totalorder %s95, %s96
      %p105 = scmp.eq.s32.totalorder %s22, 0
      %p106 = por %p104, %p105
      %p107 = scmp.ne.s32.totalorder %s95, %s96
      %p108 = scmp.eq.s32.totalorder %s23, 1
      %p109 = por %p107, %p108
      %p111 = scmp.ne.s32.totalorder %s96, %s110
      %p112 = scmp.eq.s32.totalorder %s23, 0
      %p113 = por %p111, %p112
      %s115 = sadd.s32 %s114, 1
      %p118 = scmp.eq.s32.totalorder %s17, 1
      %p119 = scmp.ne.s32.totalorder %s114, %s116
      %p120 = scmp.eq.s32.totalorder %s17, 0
      %p121 = por %p119, %p120
      %p122 = scmp.ne.s32.totalorder %s114, %s116
      %p123 = scmp.eq.s32.totalorder %s22, 1
      %p124 = por %p122, %p123
      %p125 = scmp.ne.s32.totalorder %s116, %s117
      %p126 = scmp.eq.s32.totalorder %s22, 0
      %p127 = por %p125, %p126
      %p128 = scmp.ne.s32.totalorder %s116, %s117
      %p129 = scmp.eq.s32.totalorder %s23, 1
      %p130 = por %p128, %p129
      %p132 = scmp.ne.s32.totalorder %s117, %s131
      %p133 = scmp.eq.s32.totalorder %s23, 0
      %p134 = por %p132, %p133
      %s136 = sadd.s32 %s135, 1
      %p139 = scmp.eq.s32.totalorder %s17, 1
      %p140 = scmp.ne.s32.totalorder %s135, %s137
      %p141 = scmp.eq.s32.totalorder %s17, 0
      %p142 = por %p140, %p141
      %p143 = scmp.ne.s32.totalorder %s135, %s137
      %p144 = scmp.eq.s32.totalorder %s22, 1
      %p145 = por %p143, %p144
      %p146 = scmp.ne.s32.totalorder %s137, %s138
      %p147 = scmp.eq.s32.totalorder %s22, 0
      %p148 = por %p146, %p147
      %p149 = scmp.ne.s32.totalorder %s137, %s138
      %p150 = scmp.eq.s32.totalorder %s23, 1
      %p151 = por %p149, %p150
      %p153 = scmp.ne.s32.totalorder %s138, %s152
      %p154 = scmp.eq.s32.totalorder %s23, 0
      %p155 = por %p153, %p154
      %s157 = sadd.s32 %s156, 1
      %p160 = scmp.eq.s32.totalorder %s17, 1
      %p161 = scmp.ne.s32.totalorder %s156, %s158
      %p162 = scmp.eq.s32.totalorder %s17, 0
      %p163 = por %p161, %p162
      %p164 = scmp.ne.s32.totalorder %s156, %s158
      %p165 = scmp.eq.s32.totalorder %s22, 1
      %p166 = por %p164, %p165
      %p167 = scmp.ne.s32.totalorder %s158, %s159
      %p168 = scmp.eq.s32.totalorder %s22, 0
      %p169 = por %p167, %p168
      %p170 = scmp.ne.s32.totalorder %s158, %s159
      %p171 = scmp.eq.s32.totalorder %s23, 1
      %p172 = por %p170, %p171
      %p174 = scmp.ne.s32.totalorder %s159, %s173
      %p175 = scmp.eq.s32.totalorder %s23, 0
      %p176 = por %p174, %p175
      %s178 = sadd.s32 %s177, 1
      %p181 = scmp.eq.s32.totalorder %s17, 1
      %p182 = scmp.ne.s32.totalorder %s177, %s179
      %p183 = scmp.eq.s32.totalorder %s17, 0
      %p184 = por %p182, %p183
      %p185 = scmp.ne.s32.totalorder %s177, %s179
      %p186 = scmp.eq.s32.totalorder %s22, 1
      %p187 = por %p185, %p186
      %p188 = scmp.ne.s32.totalorder %s179, %s180
      %p189 = scmp.eq.s32.totalorder %s22, 0
      %p190 = por %p188, %p189
      %p191 = scmp.ne.s32.totalorder %s179, %s180
      %p192 = scmp.eq.s32.totalorder %s23, 1
      %p193 = por %p191, %p192
      %p195 = scmp.ne.s32.totalorder %s180, %s194
      %p196 = scmp.eq.s32.totalorder %s23, 0
      %p197 = por %p195, %p196
      %s199 = sadd.s32 %s198, 1
      %p202 = scmp.eq.s32.totalorder %s17, 1
      %p203 = scmp.ne.s32.totalorder %s198, %s200
      %p204 = scmp.eq.s32.totalorder %s17, 0
      %p205 = por %p203, %p204
      %p206 = scmp.ne.s32.totalorder %s198, %s200
      %p207 = scmp.eq.s32.totalorder %s22, 1
      %p208 = por %p206, %p207
      %p209 = scmp.ne.s32.totalorder %s200, %s201
      %p210 = scmp.eq.s32.totalorder %s22, 0
      %p211 = por %p209, %p210
      %p212 = scmp.ne.s32.totalorder %s200, %s201
      %p213 = scmp.eq.s32.totalorder %s23, 1
      %p214 = por %p212, %p213
      %p216 = scmp.ne.s32.totalorder %s201, %s215
      %p217 = scmp.eq.s32.totalorder %s23, 0
      %p218 = por %p216, %p217
      %s219 = ssub.s32 %s17, %s24
      %p220 = scmp.eq.s32.totalorder %s219, 0
      %s222 = sadd.s32 %s221, 1
      %s223 = scalar_select %p220, %s221, %s222
      %p226 = pneg %p220
      %p227 = scmp.eq.s32.totalorder %s17, 1
      %p228 = por %p226, %p227
      %p229 = scmp.ne.s32.totalorder %s221, %s224
      %p230 = scmp.eq.s32.totalorder %s17, 0
      %p231 = por %p229, %p230
      %p232 = scmp.ne.s32.totalorder %s221, %s224
      %p233 = scmp.eq.s32.totalorder %s22, 1
      %p234 = por %p232, %p233
      %p235 = scmp.ne.s32.totalorder %s224, %s225
      %p236 = scmp.eq.s32.totalorder %s22, 0
      %p237 = por %p235, %p236
      %p238 = scmp.ne.s32.totalorder %s224, %s225
      %p239 = scmp.eq.s32.totalorder %s23, 1
      %p240 = por %p238, %p239
      %p242 = scmp.ne.s32.totalorder %s225, %s241
      %p243 = scmp.eq.s32.totalorder %s23, 0
      %p244 = por %p242, %p243
      %p245 = scmp.le.s32.totalorder 1, %s17
      %p246 = scmp.lt.s32.totalorder %s17, 3
      %p247 = pnand %p245, %p246
      %p248 = pneg %p247
      // Predicated region
      $region9: #{dqn_forward.1} parent=5 // pred_check
        _
      $region10: #{dqn_forward.1} parent=5 // pred_check_branch
        %250 = sbr.rel (%p247) target = $region12
      $region11: #{dqn_forward.1} parent=5 // pred_region
        %s251 = ssub.s32 %s17, 1
        // Predicated region
        $region13: #{dqn_forward.1} parent=11 // pred_check
          %p252 = pneg %p64
        $region14: #{dqn_forward.1} parent=11 // pred_check_branch
          %254 = sbr.rel (%p252) target = $region16
        $region15: #{dqn_forward.1} parent=11 // pred_region
          _
        $region16: #{dqn_forward.1} parent=11 // pred_fallthru
          _
        // Predicated region
        $region17: #{dqn_forward.1} parent=11 // pred_check
          %p255 = pneg %p85
        $region18: #{dqn_forward.1} parent=11 // pred_check_branch
          %257 = sbr.rel (%p255) target = $region20
        $region19: #{dqn_forward.1} parent=11 // pred_region
          %s259 = ssub.s32 64, 64
          %260 = vsyncadd [#allocation3], %s259
          %s262 = sshll.u32 [#allocation2], 4
          %s263 = int_to_ptr.vmem [resolvable:$true] %s262
          %265 = dma.hbm_to_vmem [thread:$0]  %s2, 64, %s263, [#allocation3]
        $region20: #{dqn_forward.1} parent=11 // pred_fallthru
          _
        // Predicated region
        $region21: #{dqn_forward.1} parent=11 // pred_check
          %p266 = pneg %p106
        $region22: #{dqn_forward.1} parent=11 // pred_check_branch
          %268 = sbr.rel (%p266) target = $region24
        $region23: #{dqn_forward.1} parent=11 // pred_region
          _
        $region24: #{dqn_forward.1} parent=11 // pred_fallthru
          _
        // Predicated region
        $region25: #{dqn_forward.1} parent=11 // pred_check
          %p269 = pneg %p127
        $region26: #{dqn_forward.1} parent=11 // pred_check_branch
          %271 = sbr.rel (%p269) target = $region28
        $region27: #{dqn_forward.1} parent=11 // pred_region
          %s273 = ssub.s32 32, 32
          %274 = vsyncadd [#allocation5], %s273
          %s276 = sshll.u32 [#allocation4], 4
          %s277 = int_to_ptr.vmem [resolvable:$true] %s276
          %279 = dma.hbm_to_vmem [thread:$0]  %s4, 32, %s277, [#allocation5]
        $region28: #{dqn_forward.1} parent=11 // pred_fallthru
          _
        // Predicated region
        $region29: #{dqn_forward.1} parent=11 // pred_check
          %p280 = pneg %p148
        $region30: #{dqn_forward.1} parent=11 // pred_check_branch
          %282 = sbr.rel (%p280) target = $region32
        $region31: #{dqn_forward.1} parent=11 // pred_region
          _
        $region32: #{dqn_forward.1} parent=11 // pred_fallthru
          _
        // Predicated region
        $region33: #{dqn_forward.1} parent=11 // pred_check
          %p283 = pneg %p169
        $region34: #{dqn_forward.1} parent=11 // pred_check_branch
          %285 = sbr.rel (%p283) target = $region36
        $region35: #{dqn_forward.1} parent=11 // pred_region
          _
        $region36: #{dqn_forward.1} parent=11 // pred_fallthru
          _
        // Predicated region
        $region37: #{dqn_forward.1} parent=11 // pred_check
          %p286 = pneg %p190
        $region38: #{dqn_forward.1} parent=11 // pred_check_branch
          %288 = sbr.rel (%p286) target = $region40
        $region39: #{dqn_forward.1} parent=11 // pred_region
          _
        $region40: #{dqn_forward.1} parent=11 // pred_fallthru
          _
        // Predicated region
        $region41: #{dqn_forward.1} parent=11 // pred_check
          %p289 = pneg %p211
        $region42: #{dqn_forward.1} parent=11 // pred_check_branch
          %291 = sbr.rel (%p289) target = $region44
        $region43: #{dqn_forward.1} parent=11 // pred_region
          %s293 = ssub.s32 16, 16
          %294 = vsyncadd [#allocation5], %s293
          %s296 = sshll.u32 [#allocation6], 4
          %s297 = int_to_ptr.vmem [resolvable:$true] %s296
          %299 = dma.hbm_to_vmem [thread:$0]  %s8, 16, %s297, [#allocation5]
        $region44: #{dqn_forward.1} parent=11 // pred_fallthru
          _
      $region12: #{dqn_forward.1} parent=5 // pred_fallthru
        _
      %p300 = scmp.lt.s32.totalorder %s17, 2
      // Predicated region
      $region45: #{dqn_forward.1} parent=5 // pred_check
        %p301 = pneg %p300
      $region46: #{dqn_forward.1} parent=5 // pred_check_branch
        %303 = sbr.rel (%p301) target = $region48
      $region47: #{dqn_forward.1} parent=5 // pred_region
        // Predicated region
        $region49: #{dqn_forward.1} parent=47 // pred_check
          %p304 = pneg %p37
        $region50: #{dqn_forward.1} parent=47 // pred_check_branch
          %306 = sbr.rel (%p304) target = $region52
        $region51: #{dqn_forward.1} parent=47 // pred_region
          %s307 = smul.u32 32, %s17
          %p308 = scmp.lt.s32.totalorder %s307, 63
          %s309 = scalar_select %p308, %s307, 63
          %s310 = smul.addr %s309, 8
          %s311 = scalar_lea.vmem %s0, %s310
          %s312 = smul.u32 32, %s17
        $region52: #{dqn_forward.1} parent=47 // pred_fallthru
          _
      $region48: #{dqn_forward.1} parent=5 // pred_fallthru
        _
      %p313 = scmp.le.s32.totalorder 1, %s17
      %p314 = scmp.lt.s32.totalorder %s17, 3
      %p315 = pnand %p313, %p314
      %p316 = pneg %p315
      // Predicated region
      $region53: #{dqn_forward.1} parent=5 // pred_check
        _
      $region54: #{dqn_forward.1} parent=5 // pred_check_branch
        %318 = sbr.rel (%p315) target = $region56
      $region55: #{dqn_forward.1} parent=5 // pred_region
        %s319 = ssub.s32 %s17, 1
        // Predicated region
        $region57: #{dqn_forward.1} parent=55 // pred_check
          %p320 = pneg %p85
        $region58: #{dqn_forward.1} parent=55 // pred_check_branch
          %322 = sbr.rel (%p320) target = $region60
        $region59: #{dqn_forward.1} parent=55 // pred_region
          %323 = dma.done [#allocation3], 64
        $region60: #{dqn_forward.1} parent=55 // pred_fallthru
          _
        // Predicated region
        $region61: #{dqn_forward.1} parent=55 // pred_check
          %p324 = pneg %p127
        $region62: #{dqn_forward.1} parent=55 // pred_check_branch
          %326 = sbr.rel (%p324) target = $region64
        $region63: #{dqn_forward.1} parent=55 // pred_region
          %327 = dma.done [#allocation5], 32
        $region64: #{dqn_forward.1} parent=55 // pred_fallthru
          _
        // Predicated region
        $region65: #{dqn_forward.1} parent=55 // pred_check
          %p328 = pneg %p211
        $region66: #{dqn_forward.1} parent=55 // pred_check_branch
          %330 = sbr.rel (%p328) target = $region68
        $region67: #{dqn_forward.1} parent=55 // pred_region
          %331 = dma.done [#allocation5], 16
        $region68: #{dqn_forward.1} parent=55 // pred_fallthru
          _
        %s332 = smul.u32 32, %s22
        %p333 = scmp.lt.s32.totalorder %s332, 63
        %s334 = scalar_select %p333, %s332, 63
        %s335 = smul.addr %s334, 8
        %s336 = scalar_lea.vmem %s0, %s335
        %p337 = pneg %p43
        %p338 = pneg %p40
        %p339 = pneg %p64
        %p340 = pneg %p61
        %p341 = pneg %p85
        %p342 = pneg %p82
        %p343 = pneg %p106
        %p344 = pneg %p103
        %p345 = pneg %p127
        %p346 = pneg %p124
        %p347 = pneg %p148
        %p348 = pneg %p145
        %p349 = pneg %p169
        %p350 = pneg %p166
        %p351 = pneg %p190
        %p352 = pneg %p187
        %p353 = pneg %p211
        %p354 = pneg %p208
        %p355 = pneg %p237
        %p356 = pneg %p234
        %s357 = smul.u32 32, %s22
        %p358 = scmp.lt.s32.totalorder %s357, 63
        %s359 = scalar_select %p358, %s357, 63
        %s360 = smul.addr %s359, 4
        %s361 = scalar_lea.vmem %s9, %s360
        %s362 = smul.u32 32, %s22
        %p363 = scmp.lt.s32.totalorder %s362, 63
        %s364 = scalar_select %p363, %s362, 63
        %s365 = smul.addr %s364, 8
        %s366 = scalar_lea.vmem %s0, %s365
        %s367 = smul.u32 32, %s22
        %s368 = smul.u32 32, %s22
        %p369 = scmp.lt.s32.totalorder %s368, 63
        %s370 = scalar_select %p369, %s368, 63
        %s371 = smul.addr %s370, 4
        %s372 = scalar_lea.vmem %s9, %s371
        %s373 = smul.u32 32, %s22
        %v375 = vld [vmem:[%s366] sm:$0xff]
        %v376 = vld [vmem:[%s366 + $0x8] sm:$0xff]
        %v377 = vld [vmem:[%s366 + $0x10] sm:$0xff]
        %v378 = vld [vmem:[%s366 + $0x18] sm:$0xff]
        %v379 = vld [vmem:[%s366 + $0x20] sm:$0xff]
        %v380 = vld [vmem:[%s366 + $0x28] sm:$0xff]
        %v381 = vld [vmem:[%s366 + $0x30] sm:$0xff]
        %v382 = vld [vmem:[%s366 + $0x38] sm:$0xff]
        %v383 = vld [vmem:[%s366 + $0x40] sm:$0xff]
        %v384 = vld [vmem:[%s366 + $0x48] sm:$0xff]
        %v385 = vld [vmem:[%s366 + $0x50] sm:$0xff]
        %v386 = vld [vmem:[%s366 + $0x58] sm:$0xff]
        %v387 = vld [vmem:[%s366 + $0x60] sm:$0xff]
        %v388 = vld [vmem:[%s366 + $0x68] sm:$0xff]
        %v389 = vld [vmem:[%s366 + $0x70] sm:$0xff]
        %v390 = vld [vmem:[%s366 + $0x78] sm:$0xff]
        %v391 = vld [vmem:[%s366 + $0x80] sm:$0xff]
        %v392 = vld [vmem:[%s366 + $0x88] sm:$0xff]
        %v393 = vld [vmem:[%s366 + $0x90] sm:$0xff]
        %v394 = vld [vmem:[%s366 + $0x98] sm:$0xff]
        %v395 = vld [vmem:[%s366 + $0xa0] sm:$0xff]
        %v396 = vld [vmem:[%s366 + $0xa8] sm:$0xff]
        %v397 = vld [vmem:[%s366 + $0xb0] sm:$0xff]
        %v398 = vld [vmem:[%s366 + $0xb8] sm:$0xff]
        %v399 = vld [vmem:[%s366 + $0xc0] sm:$0xff]
        %v400 = vld [vmem:[%s366 + $0xc8] sm:$0xff]
        %v401 = vld [vmem:[%s366 + $0xd0] sm:$0xff]
        %v402 = vld [vmem:[%s366 + $0xd8] sm:$0xff]
        %v403 = vld [vmem:[%s366 + $0xe0] sm:$0xff]
        %v404 = vld [vmem:[%s366 + $0xe8] sm:$0xff]
        %v405 = vld [vmem:[%s366 + $0xf0] sm:$0xff]
        %v406 = vld [vmem:[%s366 + $0xf8] sm:$0xff]
        %v407 = vld [vmem:[%s1] sm:$0xff]
        %v408 = vld [vmem:[%s1 + $0x8] sm:$0xff]
        %v409 = vld [vmem:[%s1 + $0x10] sm:$0xff]
        %v410 = vld [vmem:[%s1 + $0x18] sm:$0xff]
        %v411 = vld [vmem:[%s1 + $0x20] sm:$0xff]
        %v412 = vld [vmem:[%s1 + $0x28] sm:$0xff]
        %v413 = vld [vmem:[%s1 + $0x30] sm:$0xff]
        %v414 = vld [vmem:[%s1 + $0x38] sm:$0xff]
        %v415 = vld [vmem:[%s1 + $0x40] sm:$0xff]
        %v416 = vld [vmem:[%s1 + $0x48] sm:$0xff]
        %v417 = vld [vmem:[%s1 + $0x50] sm:$0xff]
        %v418 = vld [vmem:[%s1 + $0x58] sm:$0xff]
        %v419 = vld [vmem:[%s1 + $0x60] sm:$0xff]
        %v420 = vld [vmem:[%s1 + $0x68] sm:$0xff]
        %v421 = vld [vmem:[%s1 + $0x70] sm:$0xff]
        %v422 = vld [vmem:[%s1 + $0x78] sm:$0xff]
        %v423 = vld [vmem:[%s1 + $0x80] sm:$0xff]
        %v424 = vld [vmem:[%s1 + $0x88] sm:$0xff]
        %v425 = vld [vmem:[%s1 + $0x90] sm:$0xff]
        %v426 = vld [vmem:[%s1 + $0x98] sm:$0xff]
        %v427 = vld [vmem:[%s1 + $0xa0] sm:$0xff]
        %v428 = vld [vmem:[%s1 + $0xa8] sm:$0xff]
        %v429 = vld [vmem:[%s1 + $0xb0] sm:$0xff]
        %v430 = vld [vmem:[%s1 + $0xb8] sm:$0xff]
        %v431 = vld [vmem:[%s1 + $0xc0] sm:$0xff]
        %v432 = vld [vmem:[%s1 + $0xc8] sm:$0xff]
        %v433 = vld [vmem:[%s1 + $0xd0] sm:$0xff]
        %v434 = vld [vmem:[%s1 + $0xd8] sm:$0xff]
        %v435 = vld [vmem:[%s1 + $0xe0] sm:$0xff]
        %v436 = vld [vmem:[%s1 + $0xe8] sm:$0xff]
        %v437 = vld [vmem:[%s1 + $0xf0] sm:$0xff]
        %v438 = vld [vmem:[%s1 + $0xf8] sm:$0xff]
        %v439 = vld [vmem:[%s1 + $0x100] sm:$0xff]
        %v440 = vld [vmem:[%s1 + $0x108] sm:$0xff]
        %v441 = vld [vmem:[%s1 + $0x110] sm:$0xff]
        %v442 = vld [vmem:[%s1 + $0x118] sm:$0xff]
        %v443 = vld [vmem:[%s1 + $0x120] sm:$0xff]
        %v444 = vld [vmem:[%s1 + $0x128] sm:$0xff]
        %v445 = vld [vmem:[%s1 + $0x130] sm:$0xff]
        %v446 = vld [vmem:[%s1 + $0x138] sm:$0xff]
        %v447 = vld [vmem:[%s1 + $0x140] sm:$0xff]
        %v448 = vld [vmem:[%s1 + $0x148] sm:$0xff]
        %v449 = vld [vmem:[%s1 + $0x150] sm:$0xff]
        %v450 = vld [vmem:[%s1 + $0x158] sm:$0xff]
        %v451 = vld [vmem:[%s1 + $0x160] sm:$0xff]
        %v452 = vld [vmem:[%s1 + $0x168] sm:$0xff]
        %v453 = vld [vmem:[%s1 + $0x170] sm:$0xff]
        %v454 = vld [vmem:[%s1 + $0x178] sm:$0xff]
        %v455 = vld [vmem:[%s1 + $0x180] sm:$0xff]
        %v456 = vld [vmem:[%s1 + $0x188] sm:$0xff]
        %v457 = vld [vmem:[%s1 + $0x190] sm:$0xff]
        %v458 = vld [vmem:[%s1 + $0x198] sm:$0xff]
        %v459 = vld [vmem:[%s1 + $0x1a0] sm:$0xff]
        %v460 = vld [vmem:[%s1 + $0x1a8] sm:$0xff]
        %v461 = vld [vmem:[%s1 + $0x1b0] sm:$0xff]
        %v462 = vld [vmem:[%s1 + $0x1b8] sm:$0xff]
        %v463 = vld [vmem:[%s1 + $0x1c0] sm:$0xff]
        %v464 = vld [vmem:[%s1 + $0x1c8] sm:$0xff]
        %v465 = vld [vmem:[%s1 + $0x1d0] sm:$0xff]
        %v466 = vld [vmem:[%s1 + $0x1d8] sm:$0xff]
        %v467 = vld [vmem:[%s1 + $0x1e0] sm:$0xff]
        %v468 = vld [vmem:[%s1 + $0x1e8] sm:$0xff]
        %v469 = vld [vmem:[%s1 + $0x1f0] sm:$0xff]
        %v470 = vld [vmem:[%s1 + $0x1f8] sm:$0xff]
        %v471 = vld [vmem:[#allocation2] sm:$0xf]
        %v473 = vlaneseq
        %v474 = vshrl.u32 %v473, 7
        %v475 = vsub.s32 0, %v474
        %v476 = vrot.slane %v471, %v475
        %v477 = vlaneseq
        %v478 = vshrl.u32 %v477, 7
        %v479 = vsub.s32 1, %v478
        %v480 = vrot.slane %v471, %v479
        %v481 = vlaneseq
        %v482 = vshrl.u32 %v481, 7
        %v483 = vsub.s32 2, %v482
        %v484 = vrot.slane %v471, %v483
        %v485 = vlaneseq
        %v486 = vshrl.u32 %v485, 7
        %v487 = vsub.s32 3, %v486
        %v488 = vrot.slane %v471, %v487
        %493 = vmatprep.subr.mxu0 %v468
        %494 = vmatpush1.msra.mxu0 %v467
        %495 = vmatprep.subr.mxu0 %v464
        %496 = vmatpush1.msra.mxu0 %v463
        %497 = vmatprep.subr.mxu0 %v460
        %498 = vmatpush1.msra.mxu0 %v459
        %499 = vmatprep.subr.mxu0 %v456
        %500 = vmatpush1.msra.mxu0 %v455
        %501 = vmatprep.subr.mxu0 %v452
        %502 = vmatpush1.msra.mxu0 %v451
        %503 = vmatprep.subr.mxu0 %v448
        %504 = vmatpush1.msra.mxu0 %v447
        %505 = vmatprep.subr.mxu0 %v444
        %506 = vmatpush1.msra.mxu0 %v443
        %507 = vmatprep.subr.mxu0 %v440
        %508 = vmatpush1.msra.mxu0 %v439
        %509 = vmatprep.subr.mxu0 %v436
        %510 = vmatpush1.msra.mxu0 %v435
        %511 = vmatprep.subr.mxu0 %v432
        %512 = vmatpush1.msra.mxu0 %v431
        %513 = vmatprep.subr.mxu0 %v428
        %514 = vmatpush1.msra.mxu0 %v427
        %515 = vmatprep.subr.mxu0 %v424
        %516 = vmatpush1.msra.mxu0 %v423
        %517 = vmatprep.subr.mxu0 %v420
        %518 = vmatpush1.msra.mxu0 %v419
        %519 = vmatprep.subr.mxu0 %v416
        %520 = vmatpush1.msra.mxu0 %v415
        %521 = vmatprep.subr.mxu0 %v412
        %522 = vmatpush1.msra.mxu0 %v411
        %523 = vmatprep.subr.mxu0 %v408
        %524 = vmatpush1.msra.mxu0 %v407
        %525 = vmatprep.subr.mxu0 0.0
        %526 = vmatpush2.msra.mxu0 0.0
        %527 = vmatprep.subr.mxu0 0.0
        %528 = vmatpush2.msra.mxu0 0.0
        %529 = vmatprep.subr.mxu0 0.0
        %530 = vmatpush2.msra.mxu0 0.0
        %531 = vmatprep.subr.mxu0 0.0
        %532 = vmatpush2.msra.mxu0 0.0
        %533 = vmatprep.subr.mxu0 0.0
        %534 = vmatpush2.msra.mxu0 0.0
        %535 = vmatprep.subr.mxu0 0.0
        %536 = vmatpush2.msra.mxu0 0.0
        %537 = vmatprep.subr.mxu0 0.0
        %538 = vmatpush2.msra.mxu0 0.0
        %539 = vmatprep.subr.mxu0 0.0
        %540 = vmatpush2.msra.mxu0 0.0
        %541 = vmatprep.subr.mxu0 0.0
        %542 = vmatpush2.msra.mxu0 0.0
        %543 = vmatprep.subr.mxu0 0.0
        %544 = vmatpush2.msra.mxu0 0.0
        %545 = vmatprep.subr.mxu0 0.0
        %546 = vmatpush2.msra.mxu0 0.0
        %547 = vmatprep.subr.mxu0 0.0
        %548 = vmatpush2.msra.mxu0 0.0
        %549 = vmatprep.subr.mxu0 0.0
        %550 = vmatpush2.msra.mxu0 0.0
        %551 = vmatprep.subr.mxu0 0.0
        %552 = vmatpush2.msra.mxu0 0.0
        %553 = vmatprep.subr.mxu0 0.0
        %554 = vmatpush2.msra.mxu0 0.0
        %555 = vmatprep.subr.mxu0 0.0
        %556 = vmatpush2.msra.mxu0 0.0
        %557 = vmatprep.mubr.f32.mxu0 0.0
        %558 = vmatmul.mubr.f32.gmra.mxu0 %v375
        %v559 = vpop.f32.mrf.mxu0
        %v560 = vadd.f32 %v476, %v559
        %v561 = vpop.f32.mrf.mxu0
        %v562 = vadd.f32 %v480, %v561
        %563 = vmatprep.mubr.f32.mxu0 0.0
        %564 = vmatmul.mubr.f32.gmra.mxu0 %v376
        %v565 = vpop.f32.mrf.mxu0
        %v566 = vadd.f32 %v476, %v565
        %v567 = vpop.f32.mrf.mxu0
        %v568 = vadd.f32 %v480, %v567
        %569 = vmatprep.mubr.f32.mxu0 0.0
        %570 = vmatmul.mubr.f32.gmra.mxu0 %v377
        %v571 = vpop.f32.mrf.mxu0
        %v572 = vadd.f32 %v476, %v571
        %v573 = vpop.f32.mrf.mxu0
        %v574 = vadd.f32 %v480, %v573
        %575 = vmatprep.mubr.f32.mxu0 0.0
        %576 = vmatmul.mubr.f32.gmra.mxu0 %v378
        %v577 = vpop.f32.mrf.mxu0
        %v578 = vadd.f32 %v476, %v577
        %v579 = vpop.f32.mrf.mxu0
        %v580 = vadd.f32 %v480, %v579
        %581 = vmatprep.mubr.f32.mxu0 0.0
        %582 = vmatmul.mubr.f32.gmra.mxu0 %v379
        %v583 = vpop.f32.mrf.mxu0
        %v584 = vadd.f32 %v476, %v583
        %v585 = vpop.f32.mrf.mxu0
        %v586 = vadd.f32 %v480, %v585
        %587 = vmatprep.mubr.f32.mxu0 0.0
        %588 = vmatmul.mubr.f32.gmra.mxu0 %v380
        %v589 = vpop.f32.mrf.mxu0
        %v590 = vadd.f32 %v476, %v589
        %v591 = vpop.f32.mrf.mxu0
        %v592 = vadd.f32 %v480, %v591
        %593 = vmatprep.mubr.f32.mxu0 0.0
        %594 = vmatmul.mubr.f32.gmra.mxu0 %v381
        %v595 = vpop.f32.mrf.mxu0
        %v596 = vadd.f32 %v476, %v595
        %v597 = vpop.f32.mrf.mxu0
        %v598 = vadd.f32 %v480, %v597
        %599 = vmatprep.mubr.f32.mxu0 0.0
        %600 = vmatmul.mubr.f32.gmra.mxu0 %v382
        %v601 = vpop.f32.mrf.mxu0
        %v602 = vadd.f32 %v476, %v601
        %v603 = vpop.f32.mrf.mxu0
        %v604 = vadd.f32 %v480, %v603
        %605 = vmatprep.mubr.f32.mxu0 0.0
        %606 = vmatmul.mubr.f32.gmra.mxu0 %v383
        %v607 = vpop.f32.mrf.mxu0
        %v608 = vadd.f32 %v476, %v607
        %v609 = vpop.f32.mrf.mxu0
        %v610 = vadd.f32 %v480, %v609
        %611 = vmatprep.mubr.f32.mxu0 0.0
        %612 = vmatmul.mubr.f32.gmra.mxu0 %v384
        %v613 = vpop.f32.mrf.mxu0
        %v614 = vadd.f32 %v476, %v613
        %v615 = vpop.f32.mrf.mxu0
        %v616 = vadd.f32 %v480, %v615
        %617 = vmatprep.mubr.f32.mxu0 0.0
        %618 = vmatmul.mubr.f32.gmra.mxu0 %v385
        %v619 = vpop.f32.mrf.mxu0
        %v620 = vadd.f32 %v476, %v619
        %v621 = vpop.f32.mrf.mxu0
        %v622 = vadd.f32 %v480, %v621
        %623 = vmatprep.mubr.f32.mxu0 0.0
        %624 = vmatmul.mubr.f32.gmra.mxu0 %v386
        %v625 = vpop.f32.mrf.mxu0
        %v626 = vadd.f32 %v476, %v625
        %v627 = vpop.f32.mrf.mxu0
        %v628 = vadd.f32 %v480, %v627
        %629 = vmatprep.mubr.f32.mxu0 0.0
        %630 = vmatmul.mubr.f32.gmra.mxu0 %v387
        %v631 = vpop.f32.mrf.mxu0
        %v632 = vadd.f32 %v476, %v631
        %v633 = vpop.f32.mrf.mxu0
        %v634 = vadd.f32 %v480, %v633
        %635 = vmatprep.mubr.f32.mxu0 0.0
        %636 = vmatmul.mubr.f32.gmra.mxu0 %v388
        %v637 = vpop.f32.mrf.mxu0
        %v638 = vadd.f32 %v476, %v637
        %v639 = vpop.f32.mrf.mxu0
        %v640 = vadd.f32 %v480, %v639
        %641 = vmatprep.mubr.f32.mxu0 0.0
        %642 = vmatmul.mubr.f32.gmra.mxu0 %v389
        %v643 = vpop.f32.mrf.mxu0
        %v644 = vadd.f32 %v476, %v643
        %v645 = vpop.f32.mrf.mxu0
        %v646 = vadd.f32 %v480, %v645
        %647 = vmatprep.mubr.f32.mxu0 0.0
        %648 = vmatmul.mubr.f32.gmra.mxu0 %v390
        %v649 = vpop.f32.mrf.mxu0
        %v650 = vadd.f32 %v476, %v649
        %v651 = vpop.f32.mrf.mxu0
        %v652 = vadd.f32 %v480, %v651
        %653 = vmatprep.mubr.f32.mxu0 0.0
        %654 = vmatmul.mubr.f32.gmra.mxu0 %v391
        %v655 = vpop.f32.mrf.mxu0
        %v656 = vadd.f32 %v476, %v655
        %v657 = vpop.f32.mrf.mxu0
        %v658 = vadd.f32 %v480, %v657
        %659 = vmatprep.mubr.f32.mxu0 0.0
        %660 = vmatmul.mubr.f32.gmra.mxu0 %v392
        %v661 = vpop.f32.mrf.mxu0
        %v662 = vadd.f32 %v476, %v661
        %v663 = vpop.f32.mrf.mxu0
        %v664 = vadd.f32 %v480, %v663
        %665 = vmatprep.mubr.f32.mxu0 0.0
        %666 = vmatmul.mubr.f32.gmra.mxu0 %v393
        %v667 = vpop.f32.mrf.mxu0
        %v668 = vadd.f32 %v476, %v667
        %v669 = vpop.f32.mrf.mxu0
        %v670 = vadd.f32 %v480, %v669
        %671 = vmatprep.mubr.f32.mxu0 0.0
        %672 = vmatmul.mubr.f32.gmra.mxu0 %v394
        %v673 = vpop.f32.mrf.mxu0
        %v674 = vadd.f32 %v476, %v673
        %v675 = vpop.f32.mrf.mxu0
        %v676 = vadd.f32 %v480, %v675
        %677 = vmatprep.mubr.f32.mxu0 0.0
        %678 = vmatmul.mubr.f32.gmra.mxu0 %v395
        %v679 = vpop.f32.mrf.mxu0
        %v680 = vadd.f32 %v476, %v679
        %v681 = vpop.f32.mrf.mxu0
        %v682 = vadd.f32 %v480, %v681
        %683 = vmatprep.mubr.f32.mxu0 0.0
        %684 = vmatmul.mubr.f32.gmra.mxu0 %v396
        %v685 = vpop.f32.mrf.mxu0
        %v686 = vadd.f32 %v476, %v685
        %v687 = vpop.f32.mrf.mxu0
        %v688 = vadd.f32 %v480, %v687
        %689 = vmatprep.mubr.f32.mxu0 0.0
        %690 = vmatmul.mubr.f32.gmra.mxu0 %v397
        %v691 = vpop.f32.mrf.mxu0
        %v692 = vadd.f32 %v476, %v691
        %v693 = vpop.f32.mrf.mxu0
        %v694 = vadd.f32 %v480, %v693
        %695 = vmatprep.mubr.f32.mxu0 0.0
        %696 = vmatmul.mubr.f32.gmra.mxu0 %v398
        %v697 = vpop.f32.mrf.mxu0
        %v698 = vadd.f32 %v476, %v697
        %v699 = vpop.f32.mrf.mxu0
        %v700 = vadd.f32 %v480, %v699
        %701 = vmatprep.mubr.f32.mxu0 0.0
        %702 = vmatmul.mubr.f32.gmra.mxu0 %v399
        %v703 = vpop.f32.mrf.mxu0
        %v704 = vadd.f32 %v476, %v703
        %v705 = vpop.f32.mrf.mxu0
        %v706 = vadd.f32 %v480, %v705
        %707 = vmatprep.mubr.f32.mxu0 0.0
        %708 = vmatmul.mubr.f32.gmra.mxu0 %v400
        %v709 = vpop.f32.mrf.mxu0
        %v710 = vadd.f32 %v476, %v709
        %v711 = vpop.f32.mrf.mxu0
        %v712 = vadd.f32 %v480, %v711
        %713 = vmatprep.mubr.f32.mxu0 0.0
        %714 = vmatmul.mubr.f32.gmra.mxu0 %v401
        %v715 = vpop.f32.mrf.mxu0
        %v716 = vadd.f32 %v476, %v715
        %v717 = vpop.f32.mrf.mxu0
        %v718 = vadd.f32 %v480, %v717
        %719 = vmatprep.mubr.f32.mxu0 0.0
        %720 = vmatmul.mubr.f32.gmra.mxu0 %v402
        %v721 = vpop.f32.mrf.mxu0
        %v722 = vadd.f32 %v476, %v721
        %v723 = vpop.f32.mrf.mxu0
        %v724 = vadd.f32 %v480, %v723
        %725 = vmatprep.mubr.f32.mxu0 0.0
        %726 = vmatmul.mubr.f32.gmra.mxu0 %v403
        %v727 = vpop.f32.mrf.mxu0
        %v728 = vadd.f32 %v476, %v727
        %v729 = vpop.f32.mrf.mxu0
        %v730 = vadd.f32 %v480, %v729
        %731 = vmatprep.mubr.f32.mxu0 0.0
        %732 = vmatmul.mubr.f32.gmra.mxu0 %v404
        %v733 = vpop.f32.mrf.mxu0
        %v734 = vadd.f32 %v476, %v733
        %v735 = vpop.f32.mrf.mxu0
        %v736 = vadd.f32 %v480, %v735
        %737 = vmatprep.mubr.f32.mxu0 0.0
        %738 = vmatmul.mubr.f32.gmra.mxu0 %v405
        %v739 = vpop.f32.mrf.mxu0
        %v740 = vadd.f32 %v476, %v739
        %v741 = vpop.f32.mrf.mxu0
        %v742 = vadd.f32 %v480, %v741
        %743 = vmatprep.mubr.f32.mxu0 0.0
        %744 = vmatmul.mubr.f32.gmra.mxu0 %v406
        %v745 = vpop.f32.mrf.mxu0
        %v746 = vadd.f32 %v476, %v745
        %v747 = vpop.f32.mrf.mxu0
        %v748 = vadd.f32 %v480, %v747
        %749 = vdwg.mxu0
        %750 = vmatprep.subr.mxu0 %v470
        %751 = vmatpush1.msra.mxu0 %v469
        %752 = vmatprep.subr.mxu0 %v466
        %753 = vmatpush1.msra.mxu0 %v465
        %754 = vmatprep.subr.mxu0 %v462
        %755 = vmatpush1.msra.mxu0 %v461
        %756 = vmatprep.subr.mxu0 %v458
        %757 = vmatpush1.msra.mxu0 %v457
        %758 = vmatprep.subr.mxu0 %v454
        %759 = vmatpush1.msra.mxu0 %v453
        %760 = vmatprep.subr.mxu0 %v450
        %761 = vmatpush1.msra.mxu0 %v449
        %762 = vmatprep.subr.mxu0 %v446
        %763 = vmatpush1.msra.mxu0 %v445
        %764 = vmatprep.subr.mxu0 %v442
        %765 = vmatpush1.msra.mxu0 %v441
        %766 = vmatprep.subr.mxu0 %v438
        %767 = vmatpush1.msra.mxu0 %v437
        %768 = vmatprep.subr.mxu0 %v434
        %769 = vmatpush1.msra.mxu0 %v433
        %770 = vmatprep.subr.mxu0 %v430
        %771 = vmatpush1.msra.mxu0 %v429
        %772 = vmatprep.subr.mxu0 %v426
        %773 = vmatpush1.msra.mxu0 %v425
        %774 = vmatprep.subr.mxu0 %v422
        %775 = vmatpush1.msra.mxu0 %v421
        %776 = vmatprep.subr.mxu0 %v418
        %777 = vmatpush1.msra.mxu0 %v417
        %778 = vmatprep.subr.mxu0 %v414
        %779 = vmatpush1.msra.mxu0 %v413
        %780 = vmatprep.subr.mxu0 %v410
        %781 = vmatpush1.msra.mxu0 %v409
        %782 = vmatprep.subr.mxu0 0.0
        %783 = vmatpush2.msra.mxu0 0.0
        %784 = vmatprep.subr.mxu0 0.0
        %785 = vmatpush2.msra.mxu0 0.0
        %786 = vmatprep.subr.mxu0 0.0
        %787 = vmatpush2.msra.mxu0 0.0
        %788 = vmatprep.subr.mxu0 0.0
        %789 = vmatpush2.msra.mxu0 0.0
        %790 = vmatprep.subr.mxu0 0.0
        %791 = vmatpush2.msra.mxu0 0.0
        %792 = vmatprep.subr.mxu0 0.0
        %793 = vmatpush2.msra.mxu0 0.0
        %794 = vmatprep.subr.mxu0 0.0
        %795 = vmatpush2.msra.mxu0 0.0
        %796 = vmatprep.subr.mxu0 0.0
        %797 = vmatpush2.msra.mxu0 0.0
        %798 = vmatprep.subr.mxu0 0.0
        %799 = vmatpush2.msra.mxu0 0.0
        %800 = vmatprep.subr.mxu0 0.0
        %801 = vmatpush2.msra.mxu0 0.0
        %802 = vmatprep.subr.mxu0 0.0
        %803 = vmatpush2.msra.mxu0 0.0
        %804 = vmatprep.subr.mxu0 0.0
        %805 = vmatpush2.msra.mxu0 0.0
        %806 = vmatprep.subr.mxu0 0.0
        %807 = vmatpush2.msra.mxu0 0.0
        %808 = vmatprep.subr.mxu0 0.0
        %809 = vmatpush2.msra.mxu0 0.0
        %810 = vmatprep.subr.mxu0 0.0
        %811 = vmatpush2.msra.mxu0 0.0
        %812 = vmatprep.subr.mxu0 0.0
        %813 = vmatpush2.msra.mxu0 0.0
        %814 = vmatprep.mubr.f32.mxu0 0.0
        %815 = vmatmul.mubr.f32.gmra.mxu0 %v375
        %v816 = vpop.f32.mrf.mxu0
        %v817 = vadd.f32 %v484, %v816
        %v818 = vpop.f32.mrf.mxu0
        %v819 = vadd.f32 %v488, %v818
        %820 = vmatprep.mubr.f32.mxu0 0.0
        %821 = vmatmul.mubr.f32.gmra.mxu0 %v376
        %v822 = vpop.f32.mrf.mxu0
        %v823 = vadd.f32 %v484, %v822
        %v824 = vpop.f32.mrf.mxu0
        %v825 = vadd.f32 %v488, %v824
        %826 = vmatprep.mubr.f32.mxu0 0.0
        %827 = vmatmul.mubr.f32.gmra.mxu0 %v377
        %v828 = vpop.f32.mrf.mxu0
        %v829 = vadd.f32 %v484, %v828
        %v830 = vpop.f32.mrf.mxu0
        %v831 = vadd.f32 %v488, %v830
        %832 = vmatprep.mubr.f32.mxu0 0.0
        %833 = vmatmul.mubr.f32.gmra.mxu0 %v378
        %v834 = vpop.f32.mrf.mxu0
        %v835 = vadd.f32 %v484, %v834
        %v836 = vpop.f32.mrf.mxu0
        %v837 = vadd.f32 %v488, %v836
        %838 = vmatprep.mubr.f32.mxu0 0.0
        %839 = vmatmul.mubr.f32.gmra.mxu0 %v379
        %v840 = vpop.f32.mrf.mxu0
        %v841 = vadd.f32 %v484, %v840
        %v842 = vpop.f32.mrf.mxu0
        %v843 = vadd.f32 %v488, %v842
        %844 = vmatprep.mubr.f32.mxu0 0.0
        %845 = vmatmul.mubr.f32.gmra.mxu0 %v380
        %v846 = vpop.f32.mrf.mxu0
        %v847 = vadd.f32 %v484, %v846
        %v848 = vpop.f32.mrf.mxu0
        %v849 = vadd.f32 %v488, %v848
        %850 = vmatprep.mubr.f32.mxu0 0.0
        %851 = vmatmul.mubr.f32.gmra.mxu0 %v381
        %v852 = vpop.f32.mrf.mxu0
        %v853 = vadd.f32 %v484, %v852
        %v854 = vpop.f32.mrf.mxu0
        %v855 = vadd.f32 %v488, %v854
        %856 = vmatprep.mubr.f32.mxu0 0.0
        %857 = vmatmul.mubr.f32.gmra.mxu0 %v382
        %v858 = vpop.f32.mrf.mxu0
        %v859 = vadd.f32 %v484, %v858
        %v860 = vpop.f32.mrf.mxu0
        %v861 = vadd.f32 %v488, %v860
        %862 = vmatprep.mubr.f32.mxu0 0.0
        %863 = vmatmul.mubr.f32.gmra.mxu0 %v383
        %v864 = vpop.f32.mrf.mxu0
        %v865 = vadd.f32 %v484, %v864
        %v866 = vpop.f32.mrf.mxu0
        %v867 = vadd.f32 %v488, %v866
        %868 = vmatprep.mubr.f32.mxu0 0.0
        %869 = vmatmul.mubr.f32.gmra.mxu0 %v384
        %v870 = vpop.f32.mrf.mxu0
        %v871 = vadd.f32 %v484, %v870
        %v872 = vpop.f32.mrf.mxu0
        %v873 = vadd.f32 %v488, %v872
        %874 = vmatprep.mubr.f32.mxu0 0.0
        %875 = vmatmul.mubr.f32.gmra.mxu0 %v385
        %v876 = vpop.f32.mrf.mxu0
        %v877 = vadd.f32 %v484, %v876
        %v878 = vpop.f32.mrf.mxu0
        %v879 = vadd.f32 %v488, %v878
        %880 = vmatprep.mubr.f32.mxu0 0.0
        %881 = vmatmul.mubr.f32.gmra.mxu0 %v386
        %v882 = vpop.f32.mrf.mxu0
        %v883 = vadd.f32 %v484, %v882
        %v884 = vpop.f32.mrf.mxu0
        %v885 = vadd.f32 %v488, %v884
        %886 = vmatprep.mubr.f32.mxu0 0.0
        %887 = vmatmul.mubr.f32.gmra.mxu0 %v387
        %v888 = vpop.f32.mrf.mxu0
        %v889 = vadd.f32 %v484, %v888
        %v890 = vpop.f32.mrf.mxu0
        %v891 = vadd.f32 %v488, %v890
        %892 = vmatprep.mubr.f32.mxu0 0.0
        %893 = vmatmul.mubr.f32.gmra.mxu0 %v388
        %v894 = vpop.f32.mrf.mxu0
        %v895 = vadd.f32 %v484, %v894
        %v896 = vpop.f32.mrf.mxu0
        %v897 = vadd.f32 %v488, %v896
        %898 = vmatprep.mubr.f32.mxu0 0.0
        %899 = vmatmul.mubr.f32.gmra.mxu0 %v389
        %v900 = vpop.f32.mrf.mxu0
        %v901 = vadd.f32 %v484, %v900
        %v902 = vpop.f32.mrf.mxu0
        %v903 = vadd.f32 %v488, %v902
        %904 = vmatprep.mubr.f32.mxu0 0.0
        %905 = vmatmul.mubr.f32.gmra.mxu0 %v390
        %v906 = vpop.f32.mrf.mxu0
        %v907 = vadd.f32 %v484, %v906
        %v908 = vpop.f32.mrf.mxu0
        %v909 = vadd.f32 %v488, %v908
        %910 = vmatprep.mubr.f32.mxu0 0.0
        %911 = vmatmul.mubr.f32.gmra.mxu0 %v391
        %v912 = vpop.f32.mrf.mxu0
        %v913 = vadd.f32 %v484, %v912
        %v914 = vpop.f32.mrf.mxu0
        %v915 = vadd.f32 %v488, %v914
        %916 = vmatprep.mubr.f32.mxu0 0.0
        %917 = vmatmul.mubr.f32.gmra.mxu0 %v392
        %v918 = vpop.f32.mrf.mxu0
        %v919 = vadd.f32 %v484, %v918
        %v920 = vpop.f32.mrf.mxu0
        %v921 = vadd.f32 %v488, %v920
        %922 = vmatprep.mubr.f32.mxu0 0.0
        %923 = vmatmul.mubr.f32.gmra.mxu0 %v393
        %v924 = vpop.f32.mrf.mxu0
        %v925 = vadd.f32 %v484, %v924
        %v926 = vpop.f32.mrf.mxu0
        %v927 = vadd.f32 %v488, %v926
        %928 = vmatprep.mubr.f32.mxu0 0.0
        %929 = vmatmul.mubr.f32.gmra.mxu0 %v394
        %v930 = vpop.f32.mrf.mxu0
        %v931 = vadd.f32 %v484, %v930
        %v932 = vpop.f32.mrf.mxu0
        %v933 = vadd.f32 %v488, %v932
        %934 = vmatprep.mubr.f32.mxu0 0.0
        %935 = vmatmul.mubr.f32.gmra.mxu0 %v395
        %v936 = vpop.f32.mrf.mxu0
        %v937 = vadd.f32 %v484, %v936
        %v938 = vpop.f32.mrf.mxu0
        %v939 = vadd.f32 %v488, %v938
        %940 = vmatprep.mubr.f32.mxu0 0.0
        %941 = vmatmul.mubr.f32.gmra.mxu0 %v396
        %v942 = vpop.f32.mrf.mxu0
        %v943 = vadd.f32 %v484, %v942
        %v944 = vpop.f32.mrf.mxu0
        %v945 = vadd.f32 %v488, %v944
        %946 = vmatprep.mubr.f32.mxu0 0.0
        %947 = vmatmul.mubr.f32.gmra.mxu0 %v397
        %v948 = vpop.f32.mrf.mxu0
        %v949 = vadd.f32 %v484, %v948
        %v950 = vpop.f32.mrf.mxu0
        %v951 = vadd.f32 %v488, %v950
        %952 = vmatprep.mubr.f32.mxu0 0.0
        %953 = vmatmul.mubr.f32.gmra.mxu0 %v398
        %v954 = vpop.f32.mrf.mxu0
        %v955 = vadd.f32 %v484, %v954
        %v956 = vpop.f32.mrf.mxu0
        %v957 = vadd.f32 %v488, %v956
        %958 = vmatprep.mubr.f32.mxu0 0.0
        %959 = vmatmul.mubr.f32.gmra.mxu0 %v399
        %v960 = vpop.f32.mrf.mxu0
        %v961 = vadd.f32 %v484, %v960
        %v962 = vpop.f32.mrf.mxu0
        %v963 = vadd.f32 %v488, %v962
        %964 = vmatprep.mubr.f32.mxu0 0.0
        %965 = vmatmul.mubr.f32.gmra.mxu0 %v400
        %v966 = vpop.f32.mrf.mxu0
        %v967 = vadd.f32 %v484, %v966
        %v968 = vpop.f32.mrf.mxu0
        %v969 = vadd.f32 %v488, %v968
        %970 = vmatprep.mubr.f32.mxu0 0.0
        %971 = vmatmul.mubr.f32.gmra.mxu0 %v401
        %v972 = vpop.f32.mrf.mxu0
        %v973 = vadd.f32 %v484, %v972
        %v974 = vpop.f32.mrf.mxu0
        %v975 = vadd.f32 %v488, %v974
        %976 = vmatprep.mubr.f32.mxu0 0.0
        %977 = vmatmul.mubr.f32.gmra.mxu0 %v402
        %v978 = vpop.f32.mrf.mxu0
        %v979 = vadd.f32 %v484, %v978
        %v980 = vpop.f32.mrf.mxu0
        %v981 = vadd.f32 %v488, %v980
        %982 = vmatprep.mubr.f32.mxu0 0.0
        %983 = vmatmul.mubr.f32.gmra.mxu0 %v403
        %v984 = vpop.f32.mrf.mxu0
        %v985 = vadd.f32 %v484, %v984
        %v986 = vpop.f32.mrf.mxu0
        %v987 = vadd.f32 %v488, %v986
        %988 = vmatprep.mubr.f32.mxu0 0.0
        %989 = vmatmul.mubr.f32.gmra.mxu0 %v404
        %v990 = vpop.f32.mrf.mxu0
        %v991 = vadd.f32 %v484, %v990
        %v992 = vpop.f32.mrf.mxu0
        %v993 = vadd.f32 %v488, %v992
        %994 = vmatprep.mubr.f32.mxu0 0.0
        %995 = vmatmul.mubr.f32.gmra.mxu0 %v405
        %v996 = vpop.f32.mrf.mxu0
        %v997 = vadd.f32 %v484, %v996
        %v998 = vpop.f32.mrf.mxu0
        %v999 = vadd.f32 %v488, %v998
        %1000 = vmatprep.mubr.f32.mxu0 0.0
        %1001 = vmatmul.mubr.f32.gmra.mxu0 %v406
        %v1002 = vpop.f32.mrf.mxu0
        %v1003 = vadd.f32 %v484, %v1002
        %v1004 = vpop.f32.mrf.mxu0
        %v1005 = vadd.f32 %v488, %v1004
        %1006 = vdwg.mxu0
        %v1007 = vmax.f32 %v560, 0.0
        %v1008 = vmax.f32 %v562, 0.0
        %v1009 = vmax.f32 %v817, 0.0
        %v1010 = vmax.f32 %v819, 0.0
        %v1011 = vmax.f32 %v566, 0.0
        %v1012 = vmax.f32 %v568, 0.0
        %v1013 = vmax.f32 %v823, 0.0
        %v1014 = vmax.f32 %v825, 0.0
        %v1015 = vmax.f32 %v572, 0.0
        %v1016 = vmax.f32 %v574, 0.0
        %v1017 = vmax.f32 %v829, 0.0
        %v1018 = vmax.f32 %v831, 0.0
        %v1019 = vmax.f32 %v578, 0.0
        %v1020 = vmax.f32 %v580, 0.0
        %v1021 = vmax.f32 %v835, 0.0
        %v1022 = vmax.f32 %v837, 0.0
        %v1023 = vmax.f32 %v584, 0.0
        %v1024 = vmax.f32 %v586, 0.0
        %v1025 = vmax.f32 %v841, 0.0
        %v1026 = vmax.f32 %v843, 0.0
        %v1027 = vmax.f32 %v590, 0.0
        %v1028 = vmax.f32 %v592, 0.0
        %v1029 = vmax.f32 %v847, 0.0
        %v1030 = vmax.f32 %v849, 0.0
        %v1031 = vmax.f32 %v596, 0.0
        %v1032 = vmax.f32 %v598, 0.0
        %v1033 = vmax.f32 %v853, 0.0
        %v1034 = vmax.f32 %v855, 0.0
        %v1035 = vmax.f32 %v602, 0.0
        %v1036 = vmax.f32 %v604, 0.0
        %v1037 = vmax.f32 %v859, 0.0
        %v1038 = vmax.f32 %v861, 0.0
        %v1039 = vmax.f32 %v608, 0.0
        %v1040 = vmax.f32 %v610, 0.0
        %v1041 = vmax.f32 %v865, 0.0
        %v1042 = vmax.f32 %v867, 0.0
        %v1043 = vmax.f32 %v614, 0.0
        %v1044 = vmax.f32 %v616, 0.0
        %v1045 = vmax.f32 %v871, 0.0
        %v1046 = vmax.f32 %v873, 0.0
        %v1047 = vmax.f32 %v620, 0.0
        %v1048 = vmax.f32 %v622, 0.0
        %v1049 = vmax.f32 %v877, 0.0
        %v1050 = vmax.f32 %v879, 0.0
        %v1051 = vmax.f32 %v626, 0.0
        %v1052 = vmax.f32 %v628, 0.0
        %v1053 = vmax.f32 %v883, 0.0
        %v1054 = vmax.f32 %v885, 0.0
        %v1055 = vmax.f32 %v632, 0.0
        %v1056 = vmax.f32 %v634, 0.0
        %v1057 = vmax.f32 %v889, 0.0
        %v1058 = vmax.f32 %v891, 0.0
        %v1059 = vmax.f32 %v638, 0.0
        %v1060 = vmax.f32 %v640, 0.0
        %v1061 = vmax.f32 %v895, 0.0
        %v1062 = vmax.f32 %v897, 0.0
        %v1063 = vmax.f32 %v644, 0.0
        %v1064 = vmax.f32 %v646, 0.0
        %v1065 = vmax.f32 %v901, 0.0
        %v1066 = vmax.f32 %v903, 0.0
        %v1067 = vmax.f32 %v650, 0.0
        %v1068 = vmax.f32 %v652, 0.0
        %v1069 = vmax.f32 %v907, 0.0
        %v1070 = vmax.f32 %v909, 0.0
        %v1071 = vmax.f32 %v656, 0.0
        %v1072 = vmax.f32 %v658, 0.0
        %v1073 = vmax.f32 %v913, 0.0
        %v1074 = vmax.f32 %v915, 0.0
        %v1075 = vmax.f32 %v662, 0.0
        %v1076 = vmax.f32 %v664, 0.0
        %v1077 = vmax.f32 %v919, 0.0
        %v1078 = vmax.f32 %v921, 0.0
        %v1079 = vmax.f32 %v668, 0.0
        %v1080 = vmax.f32 %v670, 0.0
        %v1081 = vmax.f32 %v925, 0.0
        %v1082 = vmax.f32 %v927, 0.0
        %v1083 = vmax.f32 %v674, 0.0
        %v1084 = vmax.f32 %v676, 0.0
        %v1085 = vmax.f32 %v931, 0.0
        %v1086 = vmax.f32 %v933, 0.0
        %v1087 = vmax.f32 %v680, 0.0
        %v1088 = vmax.f32 %v682, 0.0
        %v1089 = vmax.f32 %v937, 0.0
        %v1090 = vmax.f32 %v939, 0.0
        %v1091 = vmax.f32 %v686, 0.0
        %v1092 = vmax.f32 %v688, 0.0
        %v1093 = vmax.f32 %v943, 0.0
        %v1094 = vmax.f32 %v945, 0.0
        %v1095 = vmax.f32 %v692, 0.0
        %v1096 = vmax.f32 %v694, 0.0
        %v1097 = vmax.f32 %v949, 0.0
        %v1098 = vmax.f32 %v951, 0.0
        %v1099 = vmax.f32 %v698, 0.0
        %v1100 = vmax.f32 %v700, 0.0
        %v1101 = vmax.f32 %v955, 0.0
        %v1102 = vmax.f32 %v957, 0.0
        %v1103 = vmax.f32 %v704, 0.0
        %v1104 = vmax.f32 %v706, 0.0
        %v1105 = vmax.f32 %v961, 0.0
        %v1106 = vmax.f32 %v963, 0.0
        %v1107 = vmax.f32 %v710, 0.0
        %v1108 = vmax.f32 %v712, 0.0
        %v1109 = vmax.f32 %v967, 0.0
        %v1110 = vmax.f32 %v969, 0.0
        %v1111 = vmax.f32 %v716, 0.0
        %v1112 = vmax.f32 %v718, 0.0
        %v1113 = vmax.f32 %v973, 0.0
        %v1114 = vmax.f32 %v975, 0.0
        %v1115 = vmax.f32 %v722, 0.0
        %v1116 = vmax.f32 %v724, 0.0
        %v1117 = vmax.f32 %v979, 0.0
        %v1118 = vmax.f32 %v981, 0.0
        %v1119 = vmax.f32 %v728, 0.0
        %v1120 = vmax.f32 %v730, 0.0
        %v1121 = vmax.f32 %v985, 0.0
        %v1122 = vmax.f32 %v987, 0.0
        %v1123 = vmax.f32 %v734, 0.0
        %v1124 = vmax.f32 %v736, 0.0
        %v1125 = vmax.f32 %v991, 0.0
        %v1126 = vmax.f32 %v993, 0.0
        %v1127 = vmax.f32 %v740, 0.0
        %v1128 = vmax.f32 %v742, 0.0
        %v1129 = vmax.f32 %v997, 0.0
        %v1130 = vmax.f32 %v999, 0.0
        %v1131 = vmax.f32 %v746, 0.0
        %v1132 = vmax.f32 %v748, 0.0
        %v1133 = vmax.f32 %v1003, 0.0
        %v1134 = vmax.f32 %v1005, 0.0
        %v1135 = vpack.c.bf16 %v1011, %v1007
        %v1136 = vpack.c.bf16 %v1012, %v1008
        %v1137 = vpack.c.bf16 %v1013, %v1009
        %v1138 = vpack.c.bf16 %v1014, %v1010
        %v1139 = vpack.c.bf16 %v1019, %v1015
        %v1140 = vpack.c.bf16 %v1020, %v1016
        %v1141 = vpack.c.bf16 %v1021, %v1017
        %v1142 = vpack.c.bf16 %v1022, %v1018
        %v1143 = vpack.c.bf16 %v1027, %v1023
        %v1144 = vpack.c.bf16 %v1028, %v1024
        %v1145 = vpack.c.bf16 %v1029, %v1025
        %v1146 = vpack.c.bf16 %v1030, %v1026
        %v1147 = vpack.c.bf16 %v1035, %v1031
        %v1148 = vpack.c.bf16 %v1036, %v1032
        %v1149 = vpack.c.bf16 %v1037, %v1033
        %v1150 = vpack.c.bf16 %v1038, %v1034
        %v1151 = vpack.c.bf16 %v1043, %v1039
        %v1152 = vpack.c.bf16 %v1044, %v1040
        %v1153 = vpack.c.bf16 %v1045, %v1041
        %v1154 = vpack.c.bf16 %v1046, %v1042
        %v1155 = vpack.c.bf16 %v1051, %v1047
        %v1156 = vpack.c.bf16 %v1052, %v1048
        %v1157 = vpack.c.bf16 %v1053, %v1049
        %v1158 = vpack.c.bf16 %v1054, %v1050
        %v1159 = vpack.c.bf16 %v1059, %v1055
        %v1160 = vpack.c.bf16 %v1060, %v1056
        %v1161 = vpack.c.bf16 %v1061, %v1057
        %v1162 = vpack.c.bf16 %v1062, %v1058
        %v1163 = vpack.c.bf16 %v1067, %v1063
        %v1164 = vpack.c.bf16 %v1068, %v1064
        %v1165 = vpack.c.bf16 %v1069, %v1065
        %v1166 = vpack.c.bf16 %v1070, %v1066
        %v1167 = vpack.c.bf16 %v1075, %v1071
        %v1168 = vpack.c.bf16 %v1076, %v1072
        %v1169 = vpack.c.bf16 %v1077, %v1073
        %v1170 = vpack.c.bf16 %v1078, %v1074
        %v1171 = vpack.c.bf16 %v1083, %v1079
        %v1172 = vpack.c.bf16 %v1084, %v1080
        %v1173 = vpack.c.bf16 %v1085, %v1081
        %v1174 = vpack.c.bf16 %v1086, %v1082
        %v1175 = vpack.c.bf16 %v1091, %v1087
        %v1176 = vpack.c.bf16 %v1092, %v1088
        %v1177 = vpack.c.bf16 %v1093, %v1089
        %v1178 = vpack.c.bf16 %v1094, %v1090
        %v1179 = vpack.c.bf16 %v1099, %v1095
        %v1180 = vpack.c.bf16 %v1100, %v1096
        %v1181 = vpack.c.bf16 %v1101, %v1097
        %v1182 = vpack.c.bf16 %v1102, %v1098
        %v1183 = vpack.c.bf16 %v1107, %v1103
        %v1184 = vpack.c.bf16 %v1108, %v1104
        %v1185 = vpack.c.bf16 %v1109, %v1105
        %v1186 = vpack.c.bf16 %v1110, %v1106
        %v1187 = vpack.c.bf16 %v1115, %v1111
        %v1188 = vpack.c.bf16 %v1116, %v1112
        %v1189 = vpack.c.bf16 %v1117, %v1113
        %v1190 = vpack.c.bf16 %v1118, %v1114
        %v1191 = vpack.c.bf16 %v1123, %v1119
        %v1192 = vpack.c.bf16 %v1124, %v1120
        %v1193 = vpack.c.bf16 %v1125, %v1121
        %v1194 = vpack.c.bf16 %v1126, %v1122
        %v1195 = vpack.c.bf16 %v1131, %v1127
        %v1196 = vpack.c.bf16 %v1132, %v1128
        %v1197 = vpack.c.bf16 %v1133, %v1129
        %v1198 = vpack.c.bf16 %v1134, %v1130
        %v1199 = vld [vmem:[%s3] sm:$0xff]
        %v1200 = vld [vmem:[%s3 + $0x8] sm:$0xff]
        %v1201 = vld [vmem:[%s3 + $0x10] sm:$0xff]
        %v1202 = vld [vmem:[%s3 + $0x18] sm:$0xff]
        %v1203 = vld [vmem:[%s3 + $0x20] sm:$0xff]
        %v1204 = vld [vmem:[%s3 + $0x28] sm:$0xff]
        %v1205 = vld [vmem:[%s3 + $0x30] sm:$0xff]
        %v1206 = vld [vmem:[%s3 + $0x38] sm:$0xff]
        %v1207 = vld [vmem:[%s3 + $0x40] sm:$0xff]
        %v1208 = vld [vmem:[%s3 + $0x48] sm:$0xff]
        %v1209 = vld [vmem:[%s3 + $0x50] sm:$0xff]
        %v1210 = vld [vmem:[%s3 + $0x58] sm:$0xff]
        %v1211 = vld [vmem:[%s3 + $0x60] sm:$0xff]
        %v1212 = vld [vmem:[%s3 + $0x68] sm:$0xff]
        %v1213 = vld [vmem:[%s3 + $0x70] sm:$0xff]
        %v1214 = vld [vmem:[%s3 + $0x78] sm:$0xff]
        %v1215 = vld [vmem:[%s3 + $0x80] sm:$0xff]
        %v1216 = vld [vmem:[%s3 + $0x88] sm:$0xff]
        %v1217 = vld [vmem:[%s3 + $0x90] sm:$0xff]
        %v1218 = vld [vmem:[%s3 + $0x98] sm:$0xff]
        %v1219 = vld [vmem:[%s3 + $0xa0] sm:$0xff]
        %v1220 = vld [vmem:[%s3 + $0xa8] sm:$0xff]
        %v1221 = vld [vmem:[%s3 + $0xb0] sm:$0xff]
        %v1222 = vld [vmem:[%s3 + $0xb8] sm:$0xff]
        %v1223 = vld [vmem:[%s3 + $0xc0] sm:$0xff]
        %v1224 = vld [vmem:[%s3 + $0xc8] sm:$0xff]
        %v1225 = vld [vmem:[%s3 + $0xd0] sm:$0xff]
        %v1226 = vld [vmem:[%s3 + $0xd8] sm:$0xff]
        %v1227 = vld [vmem:[%s3 + $0xe0] sm:$0xff]
        %v1228 = vld [vmem:[%s3 + $0xe8] sm:$0xff]
        %v1229 = vld [vmem:[%s3 + $0xf0] sm:$0xff]
        %v1230 = vld [vmem:[%s3 + $0xf8] sm:$0xff]
        %v1231 = vld [vmem:[%s3 + $0x100] sm:$0xff]
        %v1232 = vld [vmem:[%s3 + $0x108] sm:$0xff]
        %v1233 = vld [vmem:[%s3 + $0x110] sm:$0xff]
        %v1234 = vld [vmem:[%s3 + $0x118] sm:$0xff]
        %v1235 = vld [vmem:[%s3 + $0x120] sm:$0xff]
        %v1236 = vld [vmem:[%s3 + $0x128] sm:$0xff]
        %v1237 = vld [vmem:[%s3 + $0x130] sm:$0xff]
        %v1238 = vld [vmem:[%s3 + $0x138] sm:$0xff]
        %v1239 = vld [vmem:[%s3 + $0x140] sm:$0xff]
        %v1240 = vld [vmem:[%s3 + $0x148] sm:$0xff]
        %v1241 = vld [vmem:[%s3 + $0x150] sm:$0xff]
        %v1242 = vld [vmem:[%s3 + $0x158] sm:$0xff]
        %v1243 = vld [vmem:[%s3 + $0x160] sm:$0xff]
        %v1244 = vld [vmem:[%s3 + $0x168] sm:$0xff]
        %v1245 = vld [vmem:[%s3 + $0x170] sm:$0xff]
        %v1246 = vld [vmem:[%s3 + $0x178] sm:$0xff]
        %v1247 = vld [vmem:[%s3 + $0x180] sm:$0xff]
        %v1248 = vld [vmem:[%s3 + $0x188] sm:$0xff]
        %v1249 = vld [vmem:[%s3 + $0x190] sm:$0xff]
        %v1250 = vld [vmem:[%s3 + $0x198] sm:$0xff]
        %v1251 = vld [vmem:[%s3 + $0x1a0] sm:$0xff]
        %v1252 = vld [vmem:[%s3 + $0x1a8] sm:$0xff]
        %v1253 = vld [vmem:[%s3 + $0x1b0] sm:$0xff]
        %v1254 = vld [vmem:[%s3 + $0x1b8] sm:$0xff]
        %v1255 = vld [vmem:[%s3 + $0x1c0] sm:$0xff]
        %v1256 = vld [vmem:[%s3 + $0x1c8] sm:$0xff]
        %v1257 = vld [vmem:[%s3 + $0x1d0] sm:$0xff]
        %v1258 = vld [vmem:[%s3 + $0x1d8] sm:$0xff]
        %v1259 = vld [vmem:[%s3 + $0x1e0] sm:$0xff]
        %v1260 = vld [vmem:[%s3 + $0x1e8] sm:$0xff]
        %v1261 = vld [vmem:[%s3 + $0x1f0] sm:$0xff]
        %v1262 = vld [vmem:[%s3 + $0x1f8] sm:$0xff]
        %v1263 = vld [vmem:[#allocation4] sm:$0x3]
        %v1265 = vlaneseq
        %v1266 = vshrl.u32 %v1265, 7
        %v1267 = vsub.s32 0, %v1266
        %v1268 = vrot.slane %v1263, %v1267
        %v1269 = vlaneseq
        %v1270 = vshrl.u32 %v1269, 7
        %v1271 = vsub.s32 1, %v1270
        %v1272 = vrot.slane %v1263, %v1271
        %v1339 = vunpack.c.l.b16 %v1199
        %v1340 = vunpack.c.h.b16 %v1199
        %v1341 = vunpack.c.l.b16 %v1200
        %v1342 = vunpack.c.h.b16 %v1200
        %v1343 = vunpack.c.l.b16 %v1201
        %v1344 = vunpack.c.h.b16 %v1201
        %v1345 = vunpack.c.l.b16 %v1202
        %v1346 = vunpack.c.h.b16 %v1202
        %v1347 = vunpack.c.l.b16 %v1203
        %v1348 = vunpack.c.h.b16 %v1203
        %v1349 = vunpack.c.l.b16 %v1204
        %v1350 = vunpack.c.h.b16 %v1204
        %v1351 = vunpack.c.l.b16 %v1205
        %v1352 = vunpack.c.h.b16 %v1205
        %v1353 = vunpack.c.l.b16 %v1206
        %v1354 = vunpack.c.h.b16 %v1206
        %v1355 = vunpack.c.l.b16 %v1207
        %v1356 = vunpack.c.h.b16 %v1207
        %v1357 = vunpack.c.l.b16 %v1208
        %v1358 = vunpack.c.h.b16 %v1208
        %v1359 = vunpack.c.l.b16 %v1209
        %v1360 = vunpack.c.h.b16 %v1209
        %v1361 = vunpack.c.l.b16 %v1210
        %v1362 = vunpack.c.h.b16 %v1210
        %v1363 = vunpack.c.l.b16 %v1211
        %v1364 = vunpack.c.h.b16 %v1211
        %v1365 = vunpack.c.l.b16 %v1212
        %v1366 = vunpack.c.h.b16 %v1212
        %v1367 = vunpack.c.l.b16 %v1213
        %v1368 = vunpack.c.h.b16 %v1213
        %v1369 = vunpack.c.l.b16 %v1214
        %v1370 = vunpack.c.h.b16 %v1214
        %v1371 = vunpack.c.l.b16 %v1215
        %v1372 = vunpack.c.h.b16 %v1215
        %v1373 = vunpack.c.l.b16 %v1216
        %v1374 = vunpack.c.h.b16 %v1216
        %v1375 = vunpack.c.l.b16 %v1217
        %v1376 = vunpack.c.h.b16 %v1217
        %v1377 = vunpack.c.l.b16 %v1218
        %v1378 = vunpack.c.h.b16 %v1218
        %v1379 = vunpack.c.l.b16 %v1219
        %v1380 = vunpack.c.h.b16 %v1219
        %v1381 = vunpack.c.l.b16 %v1220
        %v1382 = vunpack.c.h.b16 %v1220
        %v1383 = vunpack.c.l.b16 %v1221
        %v1384 = vunpack.c.h.b16 %v1221
        %v1385 = vunpack.c.l.b16 %v1222
        %v1386 = vunpack.c.h.b16 %v1222
        %v1387 = vunpack.c.l.b16 %v1223
        %v1388 = vunpack.c.h.b16 %v1223
        %v1389 = vunpack.c.l.b16 %v1224
        %v1390 = vunpack.c.h.b16 %v1224
        %v1391 = vunpack.c.l.b16 %v1225
        %v1392 = vunpack.c.h.b16 %v1225
        %v1393 = vunpack.c.l.b16 %v1226
        %v1394 = vunpack.c.h.b16 %v1226
        %v1395 = vunpack.c.l.b16 %v1227
        %v1396 = vunpack.c.h.b16 %v1227
        %v1397 = vunpack.c.l.b16 %v1228
        %v1398 = vunpack.c.h.b16 %v1228
        %v1399 = vunpack.c.l.b16 %v1229
        %v1400 = vunpack.c.h.b16 %v1229
        %v1401 = vunpack.c.l.b16 %v1230
        %v1402 = vunpack.c.h.b16 %v1230
        %v1403 = vunpack.c.l.b16 %v1231
        %v1404 = vunpack.c.h.b16 %v1231
        %v1405 = vunpack.c.l.b16 %v1232
        %v1406 = vunpack.c.h.b16 %v1232
        %v1407 = vunpack.c.l.b16 %v1233
        %v1408 = vunpack.c.h.b16 %v1233
        %v1409 = vunpack.c.l.b16 %v1234
        %v1410 = vunpack.c.h.b16 %v1234
        %v1411 = vunpack.c.l.b16 %v1235
        %v1412 = vunpack.c.h.b16 %v1235
        %v1413 = vunpack.c.l.b16 %v1236
        %v1414 = vunpack.c.h.b16 %v1236
        %v1415 = vunpack.c.l.b16 %v1237
        %v1416 = vunpack.c.h.b16 %v1237
        %v1417 = vunpack.c.l.b16 %v1238
        %v1418 = vunpack.c.h.b16 %v1238
        %v1419 = vunpack.c.l.b16 %v1239
        %v1420 = vunpack.c.h.b16 %v1239
        %v1421 = vunpack.c.l.b16 %v1240
        %v1422 = vunpack.c.h.b16 %v1240
        %v1423 = vunpack.c.l.b16 %v1241
        %v1424 = vunpack.c.h.b16 %v1241
        %v1425 = vunpack.c.l.b16 %v1242
        %v1426 = vunpack.c.h.b16 %v1242
        %v1427 = vunpack.c.l.b16 %v1243
        %v1428 = vunpack.c.h.b16 %v1243
        %v1429 = vunpack.c.l.b16 %v1244
        %v1430 = vunpack.c.h.b16 %v1244
        %v1431 = vunpack.c.l.b16 %v1245
        %v1432 = vunpack.c.h.b16 %v1245
        %v1433 = vunpack.c.l.b16 %v1246
        %v1434 = vunpack.c.h.b16 %v1246
        %v1435 = vunpack.c.l.b16 %v1247
        %v1436 = vunpack.c.h.b16 %v1247
        %v1437 = vunpack.c.l.b16 %v1248
        %v1438 = vunpack.c.h.b16 %v1248
        %v1439 = vunpack.c.l.b16 %v1249
        %v1440 = vunpack.c.h.b16 %v1249
        %v1441 = vunpack.c.l.b16 %v1250
        %v1442 = vunpack.c.h.b16 %v1250
        %v1443 = vunpack.c.l.b16 %v1251
        %v1444 = vunpack.c.h.b16 %v1251
        %v1445 = vunpack.c.l.b16 %v1252
        %v1446 = vunpack.c.h.b16 %v1252
        %v1447 = vunpack.c.l.b16 %v1253
        %v1448 = vunpack.c.h.b16 %v1253
        %v1449 = vunpack.c.l.b16 %v1254
        %v1450 = vunpack.c.h.b16 %v1254
        %v1451 = vunpack.c.l.b16 %v1255
        %v1452 = vunpack.c.h.b16 %v1255
        %v1453 = vunpack.c.l.b16 %v1256
        %v1454 = vunpack.c.h.b16 %v1256
        %v1455 = vunpack.c.l.b16 %v1257
        %v1456 = vunpack.c.h.b16 %v1257
        %v1457 = vunpack.c.l.b16 %v1258
        %v1458 = vunpack.c.h.b16 %v1258
        %v1459 = vunpack.c.l.b16 %v1259
        %v1460 = vunpack.c.h.b16 %v1259
        %v1461 = vunpack.c.l.b16 %v1260
        %v1462 = vunpack.c.h.b16 %v1260
        %v1463 = vunpack.c.l.b16 %v1261
        %v1464 = vunpack.c.h.b16 %v1261
        %v1465 = vunpack.c.l.b16 %v1262
        %v1466 = vunpack.c.h.b16 %v1262
        %v1467 = vpack.c.b16 %v1341, %v1339
        %v1468 = vpack.c.b16 %v1342, %v1340
        %v1469 = vpack.c.b16 %v1345, %v1343
        %v1470 = vpack.c.b16 %v1346, %v1344
        %v1471 = vpack.c.b16 %v1349, %v1347
        %v1472 = vpack.c.b16 %v1350, %v1348
        %v1473 = vpack.c.b16 %v1353, %v1351
        %v1474 = vpack.c.b16 %v1354, %v1352
        %v1475 = vpack.c.b16 %v1357, %v1355
        %v1476 = vpack.c.b16 %v1358, %v1356
        %v1477 = vpack.c.b16 %v1361, %v1359
        %v1478 = vpack.c.b16 %v1362, %v1360
        %v1479 = vpack.c.b16 %v1365, %v1363
        %v1480 = vpack.c.b16 %v1366, %v1364
        %v1481 = vpack.c.b16 %v1369, %v1367
        %v1482 = vpack.c.b16 %v1370, %v1368
        %v1483 = vpack.c.b16 %v1373, %v1371
        %v1484 = vpack.c.b16 %v1374, %v1372
        %v1485 = vpack.c.b16 %v1377, %v1375
        %v1486 = vpack.c.b16 %v1378, %v1376
        %v1487 = vpack.c.b16 %v1381, %v1379
        %v1488 = vpack.c.b16 %v1382, %v1380
        %v1489 = vpack.c.b16 %v1385, %v1383
        %v1490 = vpack.c.b16 %v1386, %v1384
        %v1491 = vpack.c.b16 %v1389, %v1387
        %v1492 = vpack.c.b16 %v1390, %v1388
        %v1493 = vpack.c.b16 %v1393, %v1391
        %v1494 = vpack.c.b16 %v1394, %v1392
        %v1495 = vpack.c.b16 %v1397, %v1395
        %v1496 = vpack.c.b16 %v1398, %v1396
        %v1497 = vpack.c.b16 %v1401, %v1399
        %v1498 = vpack.c.b16 %v1402, %v1400
        %v1499 = vpack.c.b16 %v1405, %v1403
        %v1500 = vpack.c.b16 %v1406, %v1404
        %v1501 = vpack.c.b16 %v1409, %v1407
        %v1502 = vpack.c.b16 %v1410, %v1408
        %v1503 = vpack.c.b16 %v1413, %v1411
        %v1504 = vpack.c.b16 %v1414, %v1412
        %v1505 = vpack.c.b16 %v1417, %v1415
        %v1506 = vpack.c.b16 %v1418, %v1416
        %v1507 = vpack.c.b16 %v1421, %v1419
        %v1508 = vpack.c.b16 %v1422, %v1420
        %v1509 = vpack.c.b16 %v1425, %v1423
        %v1510 = vpack.c.b16 %v1426, %v1424
        %v1511 = vpack.c.b16 %v1429, %v1427
        %v1512 = vpack.c.b16 %v1430, %v1428
        %v1513 = vpack.c.b16 %v1433, %v1431
        %v1514 = vpack.c.b16 %v1434, %v1432
        %v1515 = vpack.c.b16 %v1437, %v1435
        %v1516 = vpack.c.b16 %v1438, %v1436
        %v1517 = vpack.c.b16 %v1441, %v1439
        %v1518 = vpack.c.b16 %v1442, %v1440
        %v1519 = vpack.c.b16 %v1445, %v1443
        %v1520 = vpack.c.b16 %v1446, %v1444
        %v1521 = vpack.c.b16 %v1449, %v1447
        %v1522 = vpack.c.b16 %v1450, %v1448
        %v1523 = vpack.c.b16 %v1453, %v1451
        %v1524 = vpack.c.b16 %v1454, %v1452
        %v1525 = vpack.c.b16 %v1457, %v1455
        %v1526 = vpack.c.b16 %v1458, %v1456
        %v1527 = vpack.c.b16 %v1461, %v1459
        %v1528 = vpack.c.b16 %v1462, %v1460
        %v1529 = vpack.c.b16 %v1465, %v1463
        %v1530 = vpack.c.b16 %v1466, %v1464
        %1595 = vmatprep.subr.bf16.mxu0 %v1482
        %1596 = vmatpush1.bf16.msra.mxu0 %v1481
        %1597 = vmatprep.subr.bf16.mxu0 %v1480
        %1598 = vmatpush1.bf16.msra.mxu0 %v1479
        %1599 = vmatprep.subr.bf16.mxu0 %v1478
        %1600 = vmatpush1.bf16.msra.mxu0 %v1477
        %1601 = vmatprep.subr.bf16.mxu0 %v1476
        %1602 = vmatpush1.bf16.msra.mxu0 %v1475
        %1603 = vmatprep.subr.bf16.mxu0 %v1474
        %1604 = vmatpush1.bf16.msra.mxu0 %v1473
        %1605 = vmatprep.subr.bf16.mxu0 %v1472
        %1606 = vmatpush1.bf16.msra.mxu0 %v1471
        %1607 = vmatprep.subr.bf16.mxu0 %v1470
        %1608 = vmatpush1.bf16.msra.mxu0 %v1469
        %1609 = vmatprep.subr.bf16.mxu0 %v1468
        %1610 = vmatpush1.bf16.msra.mxu0 %v1467
        %1611 = vmatprep.subr.bf16.mxu0 %v1498
        %1612 = vmatpush2.bf16.msra.mxu0 %v1497
        %1613 = vmatprep.subr.bf16.mxu0 %v1496
        %1614 = vmatpush2.bf16.msra.mxu0 %v1495
        %1615 = vmatprep.subr.bf16.mxu0 %v1494
        %1616 = vmatpush2.bf16.msra.mxu0 %v1493
        %1617 = vmatprep.subr.bf16.mxu0 %v1492
        %1618 = vmatpush2.bf16.msra.mxu0 %v1491
        %1619 = vmatprep.subr.bf16.mxu0 %v1490
        %1620 = vmatpush2.bf16.msra.mxu0 %v1489
        %1621 = vmatprep.subr.bf16.mxu0 %v1488
        %1622 = vmatpush2.bf16.msra.mxu0 %v1487
        %1623 = vmatprep.subr.bf16.mxu0 %v1486
        %1624 = vmatpush2.bf16.msra.mxu0 %v1485
        %1625 = vmatprep.subr.bf16.mxu0 %v1484
        %1626 = vmatpush2.bf16.msra.mxu0 %v1483
        %1627 = vmatprep.mubr.bf16.mxu0 %v1136
        %1628 = vmatmul.mubr.bf16.gmra.mxu0 %v1135
        %v1629 = vpop.f32.mrf.mxu0
        %v1630 = vadd.f32 %v1268, %v1629
        %v1631 = vpop.f32.mrf.mxu0
        %v1632 = vadd.f32 %v1272, %v1631
        %v1633 = vpop.f32.mrf.mxu0
        %v1634 = vadd.f32 %v1268, %v1633
        %v1635 = vpop.f32.mrf.mxu0
        %v1636 = vadd.f32 %v1272, %v1635
        %1637 = vmatprep.mubr.bf16.mxu0 %v1140
        %1638 = vmatmul.mubr.bf16.gmra.mxu0 %v1139
        %v1639 = vpop.f32.mrf.mxu0
        %v1640 = vadd.f32 %v1268, %v1639
        %v1641 = vpop.f32.mrf.mxu0
        %v1642 = vadd.f32 %v1272, %v1641
        %v1643 = vpop.f32.mrf.mxu0
        %v1644 = vadd.f32 %v1268, %v1643
        %v1645 = vpop.f32.mrf.mxu0
        %v1646 = vadd.f32 %v1272, %v1645
        %1647 = vmatprep.mubr.bf16.mxu0 %v1144
        %1648 = vmatmul.mubr.bf16.gmra.mxu0 %v1143
        %v1649 = vpop.f32.mrf.mxu0
        %v1650 = vadd.f32 %v1268, %v1649
        %v1651 = vpop.f32.mrf.mxu0
        %v1652 = vadd.f32 %v1272, %v1651
        %v1653 = vpop.f32.mrf.mxu0
        %v1654 = vadd.f32 %v1268, %v1653
        %v1655 = vpop.f32.mrf.mxu0
        %v1656 = vadd.f32 %v1272, %v1655
        %1657 = vmatprep.mubr.bf16.mxu0 %v1148
        %1658 = vmatmul.mubr.bf16.gmra.mxu0 %v1147
        %v1659 = vpop.f32.mrf.mxu0
        %v1660 = vadd.f32 %v1268, %v1659
        %v1661 = vpop.f32.mrf.mxu0
        %v1662 = vadd.f32 %v1272, %v1661
        %v1663 = vpop.f32.mrf.mxu0
        %v1664 = vadd.f32 %v1268, %v1663
        %v1665 = vpop.f32.mrf.mxu0
        %v1666 = vadd.f32 %v1272, %v1665
        %1667 = vmatprep.mubr.bf16.mxu0 %v1152
        %1668 = vmatmul.mubr.bf16.gmra.mxu0 %v1151
        %v1669 = vpop.f32.mrf.mxu0
        %v1670 = vadd.f32 %v1268, %v1669
        %v1671 = vpop.f32.mrf.mxu0
        %v1672 = vadd.f32 %v1272, %v1671
        %v1673 = vpop.f32.mrf.mxu0
        %v1674 = vadd.f32 %v1268, %v1673
        %v1675 = vpop.f32.mrf.mxu0
        %v1676 = vadd.f32 %v1272, %v1675
        %1677 = vmatprep.mubr.bf16.mxu0 %v1156
        %1678 = vmatmul.mubr.bf16.gmra.mxu0 %v1155
        %v1679 = vpop.f32.mrf.mxu0
        %v1680 = vadd.f32 %v1268, %v1679
        %v1681 = vpop.f32.mrf.mxu0
        %v1682 = vadd.f32 %v1272, %v1681
        %v1683 = vpop.f32.mrf.mxu0
        %v1684 = vadd.f32 %v1268, %v1683
        %v1685 = vpop.f32.mrf.mxu0
        %v1686 = vadd.f32 %v1272, %v1685
        %1687 = vmatprep.mubr.bf16.mxu0 %v1160
        %1688 = vmatmul.mubr.bf16.gmra.mxu0 %v1159
        %v1689 = vpop.f32.mrf.mxu0
        %v1690 = vadd.f32 %v1268, %v1689
        %v1691 = vpop.f32.mrf.mxu0
        %v1692 = vadd.f32 %v1272, %v1691
        %v1693 = vpop.f32.mrf.mxu0
        %v1694 = vadd.f32 %v1268, %v1693
        %v1695 = vpop.f32.mrf.mxu0
        %v1696 = vadd.f32 %v1272, %v1695
        %1697 = vmatprep.mubr.bf16.mxu0 %v1164
        %1698 = vmatmul.mubr.bf16.gmra.mxu0 %v1163
        %v1699 = vpop.f32.mrf.mxu0
        %v1700 = vadd.f32 %v1268, %v1699
        %v1701 = vpop.f32.mrf.mxu0
        %v1702 = vadd.f32 %v1272, %v1701
        %v1703 = vpop.f32.mrf.mxu0
        %v1704 = vadd.f32 %v1268, %v1703
        %v1705 = vpop.f32.mrf.mxu0
        %v1706 = vadd.f32 %v1272, %v1705
        %1707 = vmatprep.mubr.bf16.mxu0 %v1168
        %1708 = vmatmul.mubr.bf16.gmra.mxu0 %v1167
        %v1709 = vpop.f32.mrf.mxu0
        %v1710 = vadd.f32 %v1268, %v1709
        %v1711 = vpop.f32.mrf.mxu0
        %v1712 = vadd.f32 %v1272, %v1711
        %v1713 = vpop.f32.mrf.mxu0
        %v1714 = vadd.f32 %v1268, %v1713
        %v1715 = vpop.f32.mrf.mxu0
        %v1716 = vadd.f32 %v1272, %v1715
        %1717 = vmatprep.mubr.bf16.mxu0 %v1172
        %1718 = vmatmul.mubr.bf16.gmra.mxu0 %v1171
        %v1719 = vpop.f32.mrf.mxu0
        %v1720 = vadd.f32 %v1268, %v1719
        %v1721 = vpop.f32.mrf.mxu0
        %v1722 = vadd.f32 %v1272, %v1721
        %v1723 = vpop.f32.mrf.mxu0
        %v1724 = vadd.f32 %v1268, %v1723
        %v1725 = vpop.f32.mrf.mxu0
        %v1726 = vadd.f32 %v1272, %v1725
        %1727 = vmatprep.mubr.bf16.mxu0 %v1176
        %1728 = vmatmul.mubr.bf16.gmra.mxu0 %v1175
        %v1729 = vpop.f32.mrf.mxu0
        %v1730 = vadd.f32 %v1268, %v1729
        %v1731 = vpop.f32.mrf.mxu0
        %v1732 = vadd.f32 %v1272, %v1731
        %v1733 = vpop.f32.mrf.mxu0
        %v1734 = vadd.f32 %v1268, %v1733
        %v1735 = vpop.f32.mrf.mxu0
        %v1736 = vadd.f32 %v1272, %v1735
        %1737 = vmatprep.mubr.bf16.mxu0 %v1180
        %1738 = vmatmul.mubr.bf16.gmra.mxu0 %v1179
        %v1739 = vpop.f32.mrf.mxu0
        %v1740 = vadd.f32 %v1268, %v1739
        %v1741 = vpop.f32.mrf.mxu0
        %v1742 = vadd.f32 %v1272, %v1741
        %v1743 = vpop.f32.mrf.mxu0
        %v1744 = vadd.f32 %v1268, %v1743
        %v1745 = vpop.f32.mrf.mxu0
        %v1746 = vadd.f32 %v1272, %v1745
        %1747 = vmatprep.mubr.bf16.mxu0 %v1184
        %1748 = vmatmul.mubr.bf16.gmra.mxu0 %v1183
        %v1749 = vpop.f32.mrf.mxu0
        %v1750 = vadd.f32 %v1268, %v1749
        %v1751 = vpop.f32.mrf.mxu0
        %v1752 = vadd.f32 %v1272, %v1751
        %v1753 = vpop.f32.mrf.mxu0
        %v1754 = vadd.f32 %v1268, %v1753
        %v1755 = vpop.f32.mrf.mxu0
        %v1756 = vadd.f32 %v1272, %v1755
        %1757 = vmatprep.mubr.bf16.mxu0 %v1188
        %1758 = vmatmul.mubr.bf16.gmra.mxu0 %v1187
        %v1759 = vpop.f32.mrf.mxu0
        %v1760 = vadd.f32 %v1268, %v1759
        %v1761 = vpop.f32.mrf.mxu0
        %v1762 = vadd.f32 %v1272, %v1761
        %v1763 = vpop.f32.mrf.mxu0
        %v1764 = vadd.f32 %v1268, %v1763
        %v1765 = vpop.f32.mrf.mxu0
        %v1766 = vadd.f32 %v1272, %v1765
        %1767 = vmatprep.mubr.bf16.mxu0 %v1192
        %1768 = vmatmul.mubr.bf16.gmra.mxu0 %v1191
        %v1769 = vpop.f32.mrf.mxu0
        %v1770 = vadd.f32 %v1268, %v1769
        %v1771 = vpop.f32.mrf.mxu0
        %v1772 = vadd.f32 %v1272, %v1771
        %v1773 = vpop.f32.mrf.mxu0
        %v1774 = vadd.f32 %v1268, %v1773
        %v1775 = vpop.f32.mrf.mxu0
        %v1776 = vadd.f32 %v1272, %v1775
        %1777 = vmatprep.mubr.bf16.mxu0 %v1196
        %1778 = vmatmul.mubr.bf16.gmra.mxu0 %v1195
        %v1779 = vpop.f32.mrf.mxu0
        %v1780 = vadd.f32 %v1268, %v1779
        %v1781 = vpop.f32.mrf.mxu0
        %v1782 = vadd.f32 %v1272, %v1781
        %v1783 = vpop.f32.mrf.mxu0
        %v1784 = vadd.f32 %v1268, %v1783
        %v1785 = vpop.f32.mrf.mxu0
        %v1786 = vadd.f32 %v1272, %v1785
        %1787 = vdwg.mxu0
        %1788 = vmatprep.subr.bf16.mxu0 %v1514
        %1789 = vmatpush1.bf16.msra.mxu0 %v1513
        %1790 = vmatprep.subr.bf16.mxu0 %v1512
        %1791 = vmatpush1.bf16.msra.mxu0 %v1511
        %1792 = vmatprep.subr.bf16.mxu0 %v1510
        %1793 = vmatpush1.bf16.msra.mxu0 %v1509
        %1794 = vmatprep.subr.bf16.mxu0 %v1508
        %1795 = vmatpush1.bf16.msra.mxu0 %v1507
        %1796 = vmatprep.subr.bf16.mxu0 %v1506
        %1797 = vmatpush1.bf16.msra.mxu0 %v1505
        %1798 = vmatprep.subr.bf16.mxu0 %v1504
        %1799 = vmatpush1.bf16.msra.mxu0 %v1503
        %1800 = vmatprep.subr.bf16.mxu0 %v1502
        %1801 = vmatpush1.bf16.msra.mxu0 %v1501
        %1802 = vmatprep.subr.bf16.mxu0 %v1500
        %1803 = vmatpush1.bf16.msra.mxu0 %v1499
        %1804 = vmatprep.subr.bf16.mxu0 %v1530
        %1805 = vmatpush2.bf16.msra.mxu0 %v1529
        %1806 = vmatprep.subr.bf16.mxu0 %v1528
        %1807 = vmatpush2.bf16.msra.mxu0 %v1527
        %1808 = vmatprep.subr.bf16.mxu0 %v1526
        %1809 = vmatpush2.bf16.msra.mxu0 %v1525
        %1810 = vmatprep.subr.bf16.mxu0 %v1524
        %1811 = vmatpush2.bf16.msra.mxu0 %v1523
        %1812 = vmatprep.subr.bf16.mxu0 %v1522
        %1813 = vmatpush2.bf16.msra.mxu0 %v1521
        %1814 = vmatprep.subr.bf16.mxu0 %v1520
        %1815 = vmatpush2.bf16.msra.mxu0 %v1519
        %1816 = vmatprep.subr.bf16.mxu0 %v1518
        %1817 = vmatpush2.bf16.msra.mxu0 %v1517
        %1818 = vmatprep.subr.bf16.mxu0 %v1516
        %1819 = vmatpush2.bf16.msra.mxu0 %v1515
        %1820 = vmatprep.mubr.bf16.mxu0 %v1138
        %1821 = vmatmul.mubr.bf16.gmra.mxu0 %v1137
        %v1822 = vpop.f32.mrf.mxu0
        %v1823 = vadd.f32 %v1630, %v1822
        %v1824 = vpop.f32.mrf.mxu0
        %v1825 = vadd.f32 %v1632, %v1824
        %v1826 = vpop.f32.mrf.mxu0
        %v1827 = vadd.f32 %v1634, %v1826
        %v1828 = vpop.f32.mrf.mxu0
        %v1829 = vadd.f32 %v1636, %v1828
        %1830 = vmatprep.mubr.bf16.mxu0 %v1142
        %1831 = vmatmul.mubr.bf16.gmra.mxu0 %v1141
        %v1832 = vpop.f32.mrf.mxu0
        %v1833 = vadd.f32 %v1640, %v1832
        %v1834 = vpop.f32.mrf.mxu0
        %v1835 = vadd.f32 %v1642, %v1834
        %v1836 = vpop.f32.mrf.mxu0
        %v1837 = vadd.f32 %v1644, %v1836
        %v1838 = vpop.f32.mrf.mxu0
        %v1839 = vadd.f32 %v1646, %v1838
        %1840 = vmatprep.mubr.bf16.mxu0 %v1146
        %1841 = vmatmul.mubr.bf16.gmra.mxu0 %v1145
        %v1842 = vpop.f32.mrf.mxu0
        %v1843 = vadd.f32 %v1650, %v1842
        %v1844 = vpop.f32.mrf.mxu0
        %v1845 = vadd.f32 %v1652, %v1844
        %v1846 = vpop.f32.mrf.mxu0
        %v1847 = vadd.f32 %v1654, %v1846
        %v1848 = vpop.f32.mrf.mxu0
        %v1849 = vadd.f32 %v1656, %v1848
        %1850 = vmatprep.mubr.bf16.mxu0 %v1150
        %1851 = vmatmul.mubr.bf16.gmra.mxu0 %v1149
        %v1852 = vpop.f32.mrf.mxu0
        %v1853 = vadd.f32 %v1660, %v1852
        %v1854 = vpop.f32.mrf.mxu0
        %v1855 = vadd.f32 %v1662, %v1854
        %v1856 = vpop.f32.mrf.mxu0
        %v1857 = vadd.f32 %v1664, %v1856
        %v1858 = vpop.f32.mrf.mxu0
        %v1859 = vadd.f32 %v1666, %v1858
        %1860 = vmatprep.mubr.bf16.mxu0 %v1154
        %1861 = vmatmul.mubr.bf16.gmra.mxu0 %v1153
        %v1862 = vpop.f32.mrf.mxu0
        %v1863 = vadd.f32 %v1670, %v1862
        %v1864 = vpop.f32.mrf.mxu0
        %v1865 = vadd.f32 %v1672, %v1864
        %v1866 = vpop.f32.mrf.mxu0
        %v1867 = vadd.f32 %v1674, %v1866
        %v1868 = vpop.f32.mrf.mxu0
        %v1869 = vadd.f32 %v1676, %v1868
        %1870 = vmatprep.mubr.bf16.mxu0 %v1158
        %1871 = vmatmul.mubr.bf16.gmra.mxu0 %v1157
        %v1872 = vpop.f32.mrf.mxu0
        %v1873 = vadd.f32 %v1680, %v1872
        %v1874 = vpop.f32.mrf.mxu0
        %v1875 = vadd.f32 %v1682, %v1874
        %v1876 = vpop.f32.mrf.mxu0
        %v1877 = vadd.f32 %v1684, %v1876
        %v1878 = vpop.f32.mrf.mxu0
        %v1879 = vadd.f32 %v1686, %v1878
        %1880 = vmatprep.mubr.bf16.mxu0 %v1162
        %1881 = vmatmul.mubr.bf16.gmra.mxu0 %v1161
        %v1882 = vpop.f32.mrf.mxu0
        %v1883 = vadd.f32 %v1690, %v1882
        %v1884 = vpop.f32.mrf.mxu0
        %v1885 = vadd.f32 %v1692, %v1884
        %v1886 = vpop.f32.mrf.mxu0
        %v1887 = vadd.f32 %v1694, %v1886
        %v1888 = vpop.f32.mrf.mxu0
        %v1889 = vadd.f32 %v1696, %v1888
        %1890 = vmatprep.mubr.bf16.mxu0 %v1166
        %1891 = vmatmul.mubr.bf16.gmra.mxu0 %v1165
        %v1892 = vpop.f32.mrf.mxu0
        %v1893 = vadd.f32 %v1700, %v1892
        %v1894 = vpop.f32.mrf.mxu0
        %v1895 = vadd.f32 %v1702, %v1894
        %v1896 = vpop.f32.mrf.mxu0
        %v1897 = vadd.f32 %v1704, %v1896
        %v1898 = vpop.f32.mrf.mxu0
        %v1899 = vadd.f32 %v1706, %v1898
        %1900 = vmatprep.mubr.bf16.mxu0 %v1170
        %1901 = vmatmul.mubr.bf16.gmra.mxu0 %v1169
        %v1902 = vpop.f32.mrf.mxu0
        %v1903 = vadd.f32 %v1710, %v1902
        %v1904 = vpop.f32.mrf.mxu0
        %v1905 = vadd.f32 %v1712, %v1904
        %v1906 = vpop.f32.mrf.mxu0
        %v1907 = vadd.f32 %v1714, %v1906
        %v1908 = vpop.f32.mrf.mxu0
        %v1909 = vadd.f32 %v1716, %v1908
        %1910 = vmatprep.mubr.bf16.mxu0 %v1174
        %1911 = vmatmul.mubr.bf16.gmra.mxu0 %v1173
        %v1912 = vpop.f32.mrf.mxu0
        %v1913 = vadd.f32 %v1720, %v1912
        %v1914 = vpop.f32.mrf.mxu0
        %v1915 = vadd.f32 %v1722, %v1914
        %v1916 = vpop.f32.mrf.mxu0
        %v1917 = vadd.f32 %v1724, %v1916
        %v1918 = vpop.f32.mrf.mxu0
        %v1919 = vadd.f32 %v1726, %v1918
        %1920 = vmatprep.mubr.bf16.mxu0 %v1178
        %1921 = vmatmul.mubr.bf16.gmra.mxu0 %v1177
        %v1922 = vpop.f32.mrf.mxu0
        %v1923 = vadd.f32 %v1730, %v1922
        %v1924 = vpop.f32.mrf.mxu0
        %v1925 = vadd.f32 %v1732, %v1924
        %v1926 = vpop.f32.mrf.mxu0
        %v1927 = vadd.f32 %v1734, %v1926
        %v1928 = vpop.f32.mrf.mxu0
        %v1929 = vadd.f32 %v1736, %v1928
        %1930 = vmatprep.mubr.bf16.mxu0 %v1182
        %1931 = vmatmul.mubr.bf16.gmra.mxu0 %v1181
        %v1932 = vpop.f32.mrf.mxu0
        %v1933 = vadd.f32 %v1740, %v1932
        %v1934 = vpop.f32.mrf.mxu0
        %v1935 = vadd.f32 %v1742, %v1934
        %v1936 = vpop.f32.mrf.mxu0
        %v1937 = vadd.f32 %v1744, %v1936
        %v1938 = vpop.f32.mrf.mxu0
        %v1939 = vadd.f32 %v1746, %v1938
        %1940 = vmatprep.mubr.bf16.mxu0 %v1186
        %1941 = vmatmul.mubr.bf16.gmra.mxu0 %v1185
        %v1942 = vpop.f32.mrf.mxu0
        %v1943 = vadd.f32 %v1750, %v1942
        %v1944 = vpop.f32.mrf.mxu0
        %v1945 = vadd.f32 %v1752, %v1944
        %v1946 = vpop.f32.mrf.mxu0
        %v1947 = vadd.f32 %v1754, %v1946
        %v1948 = vpop.f32.mrf.mxu0
        %v1949 = vadd.f32 %v1756, %v1948
        %1950 = vmatprep.mubr.bf16.mxu0 %v1190
        %1951 = vmatmul.mubr.bf16.gmra.mxu0 %v1189
        %v1952 = vpop.f32.mrf.mxu0
        %v1953 = vadd.f32 %v1760, %v1952
        %v1954 = vpop.f32.mrf.mxu0
        %v1955 = vadd.f32 %v1762, %v1954
        %v1956 = vpop.f32.mrf.mxu0
        %v1957 = vadd.f32 %v1764, %v1956
        %v1958 = vpop.f32.mrf.mxu0
        %v1959 = vadd.f32 %v1766, %v1958
        %1960 = vmatprep.mubr.bf16.mxu0 %v1194
        %1961 = vmatmul.mubr.bf16.gmra.mxu0 %v1193
        %v1962 = vpop.f32.mrf.mxu0
        %v1963 = vadd.f32 %v1770, %v1962
        %v1964 = vpop.f32.mrf.mxu0
        %v1965 = vadd.f32 %v1772, %v1964
        %v1966 = vpop.f32.mrf.mxu0
        %v1967 = vadd.f32 %v1774, %v1966
        %v1968 = vpop.f32.mrf.mxu0
        %v1969 = vadd.f32 %v1776, %v1968
        %1970 = vmatprep.mubr.bf16.mxu0 %v1198
        %1971 = vmatmul.mubr.bf16.gmra.mxu0 %v1197
        %v1972 = vpop.f32.mrf.mxu0
        %v1973 = vadd.f32 %v1780, %v1972
        %v1974 = vpop.f32.mrf.mxu0
        %v1975 = vadd.f32 %v1782, %v1974
        %v1976 = vpop.f32.mrf.mxu0
        %v1977 = vadd.f32 %v1784, %v1976
        %v1978 = vpop.f32.mrf.mxu0
        %v1979 = vadd.f32 %v1786, %v1978
        %1980 = vdwg.mxu0
        %v1981 = vmax.f32 %v1823, 0.0
        %v1982 = vmax.f32 %v1825, 0.0
        %v1983 = vmax.f32 %v1827, 0.0
        %v1984 = vmax.f32 %v1829, 0.0
        %v1985 = vmax.f32 %v1833, 0.0
        %v1986 = vmax.f32 %v1835, 0.0
        %v1987 = vmax.f32 %v1837, 0.0
        %v1988 = vmax.f32 %v1839, 0.0
        %v1989 = vmax.f32 %v1843, 0.0
        %v1990 = vmax.f32 %v1845, 0.0
        %v1991 = vmax.f32 %v1847, 0.0
        %v1992 = vmax.f32 %v1849, 0.0
        %v1993 = vmax.f32 %v1853, 0.0
        %v1994 = vmax.f32 %v1855, 0.0
        %v1995 = vmax.f32 %v1857, 0.0
        %v1996 = vmax.f32 %v1859, 0.0
        %v1997 = vmax.f32 %v1863, 0.0
        %v1998 = vmax.f32 %v1865, 0.0
        %v1999 = vmax.f32 %v1867, 0.0
        %v2000 = vmax.f32 %v1869, 0.0
        %v2001 = vmax.f32 %v1873, 0.0
        %v2002 = vmax.f32 %v1875, 0.0
        %v2003 = vmax.f32 %v1877, 0.0
        %v2004 = vmax.f32 %v1879, 0.0
        %v2005 = vmax.f32 %v1883, 0.0
        %v2006 = vmax.f32 %v1885, 0.0
        %v2007 = vmax.f32 %v1887, 0.0
        %v2008 = vmax.f32 %v1889, 0.0
        %v2009 = vmax.f32 %v1893, 0.0
        %v2010 = vmax.f32 %v1895, 0.0
        %v2011 = vmax.f32 %v1897, 0.0
        %v2012 = vmax.f32 %v1899, 0.0
        %v2013 = vmax.f32 %v1903, 0.0
        %v2014 = vmax.f32 %v1905, 0.0
        %v2015 = vmax.f32 %v1907, 0.0
        %v2016 = vmax.f32 %v1909, 0.0
        %v2017 = vmax.f32 %v1913, 0.0
        %v2018 = vmax.f32 %v1915, 0.0
        %v2019 = vmax.f32 %v1917, 0.0
        %v2020 = vmax.f32 %v1919, 0.0
        %v2021 = vmax.f32 %v1923, 0.0
        %v2022 = vmax.f32 %v1925, 0.0
        %v2023 = vmax.f32 %v1927, 0.0
        %v2024 = vmax.f32 %v1929, 0.0
        %v2025 = vmax.f32 %v1933, 0.0
        %v2026 = vmax.f32 %v1935, 0.0
        %v2027 = vmax.f32 %v1937, 0.0
        %v2028 = vmax.f32 %v1939, 0.0
        %v2029 = vmax.f32 %v1943, 0.0
        %v2030 = vmax.f32 %v1945, 0.0
        %v2031 = vmax.f32 %v1947, 0.0
        %v2032 = vmax.f32 %v1949, 0.0
        %v2033 = vmax.f32 %v1953, 0.0
        %v2034 = vmax.f32 %v1955, 0.0
        %v2035 = vmax.f32 %v1957, 0.0
        %v2036 = vmax.f32 %v1959, 0.0
        %v2037 = vmax.f32 %v1963, 0.0
        %v2038 = vmax.f32 %v1965, 0.0
        %v2039 = vmax.f32 %v1967, 0.0
        %v2040 = vmax.f32 %v1969, 0.0
        %v2041 = vmax.f32 %v1973, 0.0
        %v2042 = vmax.f32 %v1975, 0.0
        %v2043 = vmax.f32 %v1977, 0.0
        %v2044 = vmax.f32 %v1979, 0.0
        %v2045 = vpack.c.bf16 %v1983, %v1981
        %v2046 = vpack.c.bf16 %v1984, %v1982
        %v2047 = vpack.c.bf16 %v1987, %v1985
        %v2048 = vpack.c.bf16 %v1988, %v1986
        %v2049 = vpack.c.bf16 %v1991, %v1989
        %v2050 = vpack.c.bf16 %v1992, %v1990
        %v2051 = vpack.c.bf16 %v1995, %v1993
        %v2052 = vpack.c.bf16 %v1996, %v1994
        %v2053 = vpack.c.bf16 %v1999, %v1997
        %v2054 = vpack.c.bf16 %v2000, %v1998
        %v2055 = vpack.c.bf16 %v2003, %v2001
        %v2056 = vpack.c.bf16 %v2004, %v2002
        %v2057 = vpack.c.bf16 %v2007, %v2005
        %v2058 = vpack.c.bf16 %v2008, %v2006
        %v2059 = vpack.c.bf16 %v2011, %v2009
        %v2060 = vpack.c.bf16 %v2012, %v2010
        %v2061 = vpack.c.bf16 %v2015, %v2013
        %v2062 = vpack.c.bf16 %v2016, %v2014
        %v2063 = vpack.c.bf16 %v2019, %v2017
        %v2064 = vpack.c.bf16 %v2020, %v2018
        %v2065 = vpack.c.bf16 %v2023, %v2021
        %v2066 = vpack.c.bf16 %v2024, %v2022
        %v2067 = vpack.c.bf16 %v2027, %v2025
        %v2068 = vpack.c.bf16 %v2028, %v2026
        %v2069 = vpack.c.bf16 %v2031, %v2029
        %v2070 = vpack.c.bf16 %v2032, %v2030
        %v2071 = vpack.c.bf16 %v2035, %v2033
        %v2072 = vpack.c.bf16 %v2036, %v2034
        %v2073 = vpack.c.bf16 %v2039, %v2037
        %v2074 = vpack.c.bf16 %v2040, %v2038
        %v2075 = vpack.c.bf16 %v2043, %v2041
        %v2076 = vpack.c.bf16 %v2044, %v2042
        %v2077 = vld [vmem:[%s5] sm:$0xf]
        %v2078 = vld [vmem:[%s5 + $0x4] sm:$0xf]
        %v2079 = vld [vmem:[%s5 + $0x8] sm:$0xf]
        %v2080 = vld [vmem:[%s5 + $0xc] sm:$0xf]
        %v2081 = vld [vmem:[%s5 + $0x10] sm:$0xf]
        %v2082 = vld [vmem:[%s5 + $0x14] sm:$0xf]
        %v2083 = vld [vmem:[%s5 + $0x18] sm:$0xf]
        %v2084 = vld [vmem:[%s5 + $0x1c] sm:$0xf]
        %v2085 = vld [vmem:[%s5 + $0x20] sm:$0xf]
        %v2086 = vld [vmem:[%s5 + $0x24] sm:$0xf]
        %v2087 = vld [vmem:[%s5 + $0x28] sm:$0xf]
        %v2088 = vld [vmem:[%s5 + $0x2c] sm:$0xf]
        %v2089 = vld [vmem:[%s5 + $0x30] sm:$0xf]
        %v2090 = vld [vmem:[%s5 + $0x34] sm:$0xf]
        %v2091 = vld [vmem:[%s5 + $0x38] sm:$0xf]
        %v2092 = vld [vmem:[%s5 + $0x3c] sm:$0xf]
        %v2093 = vld [vmem:[%s5 + $0x40] sm:$0xf]
        %v2094 = vld [vmem:[%s5 + $0x44] sm:$0xf]
        %v2095 = vld [vmem:[%s5 + $0x48] sm:$0xf]
        %v2096 = vld [vmem:[%s5 + $0x4c] sm:$0xf]
        %v2097 = vld [vmem:[%s5 + $0x50] sm:$0xf]
        %v2098 = vld [vmem:[%s5 + $0x54] sm:$0xf]
        %v2099 = vld [vmem:[%s5 + $0x58] sm:$0xf]
        %v2100 = vld [vmem:[%s5 + $0x5c] sm:$0xf]
        %v2101 = vld [vmem:[%s5 + $0x60] sm:$0xf]
        %v2102 = vld [vmem:[%s5 + $0x64] sm:$0xf]
        %v2103 = vld [vmem:[%s5 + $0x68] sm:$0xf]
        %v2104 = vld [vmem:[%s5 + $0x6c] sm:$0xf]
        %v2105 = vld [vmem:[%s5 + $0x70] sm:$0xf]
        %v2106 = vld [vmem:[%s5 + $0x74] sm:$0xf]
        %v2107 = vld [vmem:[%s5 + $0x78] sm:$0xf]
        %v2108 = vld [vmem:[%s5 + $0x7c] sm:$0xf]
        %v2109 = vld [vmem:[%s6] sm:$0x1]
        %v2111 = vlaneseq
        %v2112 = vshrl.u32 %v2111, 7
        %v2113 = vsub.s32 0, %v2112
        %v2114 = vrot.slane %v2109, %v2113
        %v2148 = vunpack.c.l.b16 %v2077
        %v2149 = vunpack.c.l.b16 %v2078
        %v2150 = vunpack.c.l.b16 %v2079
        %v2151 = vunpack.c.l.b16 %v2080
        %v2152 = vunpack.c.l.b16 %v2081
        %v2153 = vunpack.c.l.b16 %v2082
        %v2154 = vunpack.c.l.b16 %v2083
        %v2155 = vunpack.c.l.b16 %v2084
        %v2156 = vunpack.c.l.b16 %v2085
        %v2157 = vunpack.c.l.b16 %v2086
        %v2158 = vunpack.c.l.b16 %v2087
        %v2159 = vunpack.c.l.b16 %v2088
        %v2160 = vunpack.c.l.b16 %v2089
        %v2161 = vunpack.c.l.b16 %v2090
        %v2162 = vunpack.c.l.b16 %v2091
        %v2163 = vunpack.c.l.b16 %v2092
        %v2164 = vunpack.c.l.b16 %v2093
        %v2165 = vunpack.c.l.b16 %v2094
        %v2166 = vunpack.c.l.b16 %v2095
        %v2167 = vunpack.c.l.b16 %v2096
        %v2168 = vunpack.c.l.b16 %v2097
        %v2169 = vunpack.c.l.b16 %v2098
        %v2170 = vunpack.c.l.b16 %v2099
        %v2171 = vunpack.c.l.b16 %v2100
        %v2172 = vunpack.c.l.b16 %v2101
        %v2173 = vunpack.c.l.b16 %v2102
        %v2174 = vunpack.c.l.b16 %v2103
        %v2175 = vunpack.c.l.b16 %v2104
        %v2176 = vunpack.c.l.b16 %v2105
        %v2177 = vunpack.c.l.b16 %v2106
        %v2178 = vunpack.c.l.b16 %v2107
        %v2179 = vunpack.c.l.b16 %v2108
        %v2180 = vpack.c.b16 %v2149, %v2148
        %v2181 = vpack.c.b16 %v2151, %v2150
        %v2182 = vpack.c.b16 %v2153, %v2152
        %v2183 = vpack.c.b16 %v2155, %v2154
        %v2184 = vpack.c.b16 %v2157, %v2156
        %v2185 = vpack.c.b16 %v2159, %v2158
        %v2186 = vpack.c.b16 %v2161, %v2160
        %v2187 = vpack.c.b16 %v2163, %v2162
        %v2188 = vpack.c.b16 %v2165, %v2164
        %v2189 = vpack.c.b16 %v2167, %v2166
        %v2190 = vpack.c.b16 %v2169, %v2168
        %v2191 = vpack.c.b16 %v2171, %v2170
        %v2192 = vpack.c.b16 %v2173, %v2172
        %v2193 = vpack.c.b16 %v2175, %v2174
        %v2194 = vpack.c.b16 %v2177, %v2176
        %v2195 = vpack.c.b16 %v2179, %v2178
        %2212 = vmatprep.subr.bf16.mxu0 0
        %2213 = vmatpush1.bf16.msra.mxu0 %v2187
        %2214 = vmatprep.subr.bf16.mxu0 0
        %2215 = vmatpush1.bf16.msra.mxu0 %v2186
        %2216 = vmatprep.subr.bf16.mxu0 0
        %2217 = vmatpush1.bf16.msra.mxu0 %v2185
        %2218 = vmatprep.subr.bf16.mxu0 0
        %2219 = vmatpush1.bf16.msra.mxu0 %v2184
        %2220 = vmatprep.subr.bf16.mxu0 0
        %2221 = vmatpush1.bf16.msra.mxu0 %v2183
        %2222 = vmatprep.subr.bf16.mxu0 0
        %2223 = vmatpush1.bf16.msra.mxu0 %v2182
        %2224 = vmatprep.subr.bf16.mxu0 0
        %2225 = vmatpush1.bf16.msra.mxu0 %v2181
        %2226 = vmatprep.subr.bf16.mxu0 0
        %2227 = vmatpush1.bf16.msra.mxu0 %v2180
        %2228 = vmatprep.subr.bf16.mxu0 0
        %2229 = vmatpush2.bf16.msra.mxu0 %v2195
        %2230 = vmatprep.subr.bf16.mxu0 0
        %2231 = vmatpush2.bf16.msra.mxu0 %v2194
        %2232 = vmatprep.subr.bf16.mxu0 0
        %2233 = vmatpush2.bf16.msra.mxu0 %v2193
        %2234 = vmatprep.subr.bf16.mxu0 0
        %2235 = vmatpush2.bf16.msra.mxu0 %v2192
        %2236 = vmatprep.subr.bf16.mxu0 0
        %2237 = vmatpush2.bf16.msra.mxu0 %v2191
        %2238 = vmatprep.subr.bf16.mxu0 0
        %2239 = vmatpush2.bf16.msra.mxu0 %v2190
        %2240 = vmatprep.subr.bf16.mxu0 0
        %2241 = vmatpush2.bf16.msra.mxu0 %v2189
        %2242 = vmatprep.subr.bf16.mxu0 0
        %2243 = vmatpush2.bf16.msra.mxu0 %v2188
        %2244 = vmatprep.mubr.bf16.mxu0 %v2046
        %2245 = vmatmul.mubr.bf16.gmra.mxu0 %v2045
        %v2246 = vpop.f32.mrf.mxu0
        %v2247 = vadd.f32 %v2114, %v2246
        %v2248 = vpop.f32.mrf.mxu0
        %v2249 = vpop.f32.mrf.mxu0
        %v2250 = vadd.f32 %v2114, %v2249
        %v2251 = vpop.f32.mrf.mxu0
        %2252 = vmatprep.mubr.bf16.mxu0 %v2048
        %2253 = vmatmul.mubr.bf16.gmra.mxu0 %v2047
        %v2254 = vpop.f32.mrf.mxu0
        %v2255 = vadd.f32 %v2114, %v2254
        %v2256 = vpop.f32.mrf.mxu0
        %v2257 = vpop.f32.mrf.mxu0
        %v2258 = vadd.f32 %v2114, %v2257
        %v2259 = vpop.f32.mrf.mxu0
        %2260 = vmatprep.mubr.bf16.mxu0 %v2050
        %2261 = vmatmul.mubr.bf16.gmra.mxu0 %v2049
        %v2262 = vpop.f32.mrf.mxu0
        %v2263 = vadd.f32 %v2114, %v2262
        %v2264 = vpop.f32.mrf.mxu0
        %v2265 = vpop.f32.mrf.mxu0
        %v2266 = vadd.f32 %v2114, %v2265
        %v2267 = vpop.f32.mrf.mxu0
        %2268 = vmatprep.mubr.bf16.mxu0 %v2052
        %2269 = vmatmul.mubr.bf16.gmra.mxu0 %v2051
        %v2270 = vpop.f32.mrf.mxu0
        %v2271 = vadd.f32 %v2114, %v2270
        %v2272 = vpop.f32.mrf.mxu0
        %v2273 = vpop.f32.mrf.mxu0
        %v2274 = vadd.f32 %v2114, %v2273
        %v2275 = vpop.f32.mrf.mxu0
        %2276 = vmatprep.mubr.bf16.mxu0 %v2054
        %2277 = vmatmul.mubr.bf16.gmra.mxu0 %v2053
        %v2278 = vpop.f32.mrf.mxu0
        %v2279 = vadd.f32 %v2114, %v2278
        %v2280 = vpop.f32.mrf.mxu0
        %v2281 = vpop.f32.mrf.mxu0
        %v2282 = vadd.f32 %v2114, %v2281
        %v2283 = vpop.f32.mrf.mxu0
        %2284 = vmatprep.mubr.bf16.mxu0 %v2056
        %2285 = vmatmul.mubr.bf16.gmra.mxu0 %v2055
        %v2286 = vpop.f32.mrf.mxu0
        %v2287 = vadd.f32 %v2114, %v2286
        %v2288 = vpop.f32.mrf.mxu0
        %v2289 = vpop.f32.mrf.mxu0
        %v2290 = vadd.f32 %v2114, %v2289
        %v2291 = vpop.f32.mrf.mxu0
        %2292 = vmatprep.mubr.bf16.mxu0 %v2058
        %2293 = vmatmul.mubr.bf16.gmra.mxu0 %v2057
        %v2294 = vpop.f32.mrf.mxu0
        %v2295 = vadd.f32 %v2114, %v2294
        %v2296 = vpop.f32.mrf.mxu0
        %v2297 = vpop.f32.mrf.mxu0
        %v2298 = vadd.f32 %v2114, %v2297
        %v2299 = vpop.f32.mrf.mxu0
        %2300 = vmatprep.mubr.bf16.mxu0 %v2060
        %2301 = vmatmul.mubr.bf16.gmra.mxu0 %v2059
        %v2302 = vpop.f32.mrf.mxu0
        %v2303 = vadd.f32 %v2114, %v2302
        %v2304 = vpop.f32.mrf.mxu0
        %v2305 = vpop.f32.mrf.mxu0
        %v2306 = vadd.f32 %v2114, %v2305
        %v2307 = vpop.f32.mrf.mxu0
        %2308 = vmatprep.mubr.bf16.mxu0 %v2062
        %2309 = vmatmul.mubr.bf16.gmra.mxu0 %v2061
        %v2310 = vpop.f32.mrf.mxu0
        %v2311 = vadd.f32 %v2114, %v2310
        %v2312 = vpop.f32.mrf.mxu0
        %v2313 = vpop.f32.mrf.mxu0
        %v2314 = vadd.f32 %v2114, %v2313
        %v2315 = vpop.f32.mrf.mxu0
        %2316 = vmatprep.mubr.bf16.mxu0 %v2064
        %2317 = vmatmul.mubr.bf16.gmra.mxu0 %v2063
        %v2318 = vpop.f32.mrf.mxu0
        %v2319 = vadd.f32 %v2114, %v2318
        %v2320 = vpop.f32.mrf.mxu0
        %v2321 = vpop.f32.mrf.mxu0
        %v2322 = vadd.f32 %v2114, %v2321
        %v2323 = vpop.f32.mrf.mxu0
        %2324 = vmatprep.mubr.bf16.mxu0 %v2066
        %2325 = vmatmul.mubr.bf16.gmra.mxu0 %v2065
        %v2326 = vpop.f32.mrf.mxu0
        %v2327 = vadd.f32 %v2114, %v2326
        %v2328 = vpop.f32.mrf.mxu0
        %v2329 = vpop.f32.mrf.mxu0
        %v2330 = vadd.f32 %v2114, %v2329
        %v2331 = vpop.f32.mrf.mxu0
        %2332 = vmatprep.mubr.bf16.mxu0 %v2068
        %2333 = vmatmul.mubr.bf16.gmra.mxu0 %v2067
        %v2334 = vpop.f32.mrf.mxu0
        %v2335 = vadd.f32 %v2114, %v2334
        %v2336 = vpop.f32.mrf.mxu0
        %v2337 = vpop.f32.mrf.mxu0
        %v2338 = vadd.f32 %v2114, %v2337
        %v2339 = vpop.f32.mrf.mxu0
        %2340 = vmatprep.mubr.bf16.mxu0 %v2070
        %2341 = vmatmul.mubr.bf16.gmra.mxu0 %v2069
        %v2342 = vpop.f32.mrf.mxu0
        %v2343 = vadd.f32 %v2114, %v2342
        %v2344 = vpop.f32.mrf.mxu0
        %v2345 = vpop.f32.mrf.mxu0
        %v2346 = vadd.f32 %v2114, %v2345
        %v2347 = vpop.f32.mrf.mxu0
        %2348 = vmatprep.mubr.bf16.mxu0 %v2072
        %2349 = vmatmul.mubr.bf16.gmra.mxu0 %v2071
        %v2350 = vpop.f32.mrf.mxu0
        %v2351 = vadd.f32 %v2114, %v2350
        %v2352 = vpop.f32.mrf.mxu0
        %v2353 = vpop.f32.mrf.mxu0
        %v2354 = vadd.f32 %v2114, %v2353
        %v2355 = vpop.f32.mrf.mxu0
        %2356 = vmatprep.mubr.bf16.mxu0 %v2074
        %2357 = vmatmul.mubr.bf16.gmra.mxu0 %v2073
        %v2358 = vpop.f32.mrf.mxu0
        %v2359 = vadd.f32 %v2114, %v2358
        %v2360 = vpop.f32.mrf.mxu0
        %v2361 = vpop.f32.mrf.mxu0
        %v2362 = vadd.f32 %v2114, %v2361
        %v2363 = vpop.f32.mrf.mxu0
        %2364 = vmatprep.mubr.bf16.mxu0 %v2076
        %2365 = vmatmul.mubr.bf16.gmra.mxu0 %v2075
        %v2366 = vpop.f32.mrf.mxu0
        %v2367 = vadd.f32 %v2114, %v2366
        %v2368 = vpop.f32.mrf.mxu0
        %v2369 = vpop.f32.mrf.mxu0
        %v2370 = vadd.f32 %v2114, %v2369
        %v2371 = vpop.f32.mrf.mxu0
        %2372 = vdwg.mxu0
        %v2373 = vmax.f32 %v2247, 0.0
        %v2374 = vmax.f32 %v2250, 0.0
        %v2375 = vmax.f32 %v2255, 0.0
        %v2376 = vmax.f32 %v2258, 0.0
        %v2377 = vmax.f32 %v2263, 0.0
        %v2378 = vmax.f32 %v2266, 0.0
        %v2379 = vmax.f32 %v2271, 0.0
        %v2380 = vmax.f32 %v2274, 0.0
        %v2381 = vmax.f32 %v2279, 0.0
        %v2382 = vmax.f32 %v2282, 0.0
        %v2383 = vmax.f32 %v2287, 0.0
        %v2384 = vmax.f32 %v2290, 0.0
        %v2385 = vmax.f32 %v2295, 0.0
        %v2386 = vmax.f32 %v2298, 0.0
        %v2387 = vmax.f32 %v2303, 0.0
        %v2388 = vmax.f32 %v2306, 0.0
        %v2389 = vmax.f32 %v2311, 0.0
        %v2390 = vmax.f32 %v2314, 0.0
        %v2391 = vmax.f32 %v2319, 0.0
        %v2392 = vmax.f32 %v2322, 0.0
        %v2393 = vmax.f32 %v2327, 0.0
        %v2394 = vmax.f32 %v2330, 0.0
        %v2395 = vmax.f32 %v2335, 0.0
        %v2396 = vmax.f32 %v2338, 0.0
        %v2397 = vmax.f32 %v2343, 0.0
        %v2398 = vmax.f32 %v2346, 0.0
        %v2399 = vmax.f32 %v2351, 0.0
        %v2400 = vmax.f32 %v2354, 0.0
        %v2401 = vmax.f32 %v2359, 0.0
        %v2402 = vmax.f32 %v2362, 0.0
        %v2403 = vmax.f32 %v2367, 0.0
        %v2404 = vmax.f32 %v2370, 0.0
        %v2405 = vpack.c.bf16 %v2374, %v2373
        %v2406 = vpack.c.bf16 %v2376, %v2375
        %v2407 = vpack.c.bf16 %v2378, %v2377
        %v2408 = vpack.c.bf16 %v2380, %v2379
        %v2409 = vpack.c.bf16 %v2382, %v2381
        %v2410 = vpack.c.bf16 %v2384, %v2383
        %v2411 = vpack.c.bf16 %v2386, %v2385
        %v2412 = vpack.c.bf16 %v2388, %v2387
        %v2413 = vpack.c.bf16 %v2390, %v2389
        %v2414 = vpack.c.bf16 %v2392, %v2391
        %v2415 = vpack.c.bf16 %v2394, %v2393
        %v2416 = vpack.c.bf16 %v2396, %v2395
        %v2417 = vpack.c.bf16 %v2398, %v2397
        %v2418 = vpack.c.bf16 %v2400, %v2399
        %v2419 = vpack.c.bf16 %v2402, %v2401
        %v2420 = vpack.c.bf16 %v2404, %v2403
        %v2421 = vld [vmem:[%s7] sm:$0xf]
        %v2422 = vld [vmem:[%s7 + $0x4] sm:$0xf]
        %v2423 = vld [vmem:[%s7 + $0x8] sm:$0xf]
        %v2424 = vld [vmem:[%s7 + $0xc] sm:$0xf]
        %v2425 = vld [vmem:[%s7 + $0x10] sm:$0xf]
        %v2426 = vld [vmem:[%s7 + $0x14] sm:$0xf]
        %v2427 = vld [vmem:[%s7 + $0x18] sm:$0xf]
        %v2428 = vld [vmem:[%s7 + $0x1c] sm:$0xf]
        %v2429 = vld [vmem:[%s7 + $0x20] sm:$0xf]
        %v2430 = vld [vmem:[%s7 + $0x24] sm:$0xf]
        %v2431 = vld [vmem:[%s7 + $0x28] sm:$0xf]
        %v2432 = vld [vmem:[%s7 + $0x2c] sm:$0xf]
        %v2433 = vld [vmem:[%s7 + $0x30] sm:$0xf]
        %v2434 = vld [vmem:[%s7 + $0x34] sm:$0xf]
        %v2435 = vld [vmem:[%s7 + $0x38] sm:$0xf]
        %v2436 = vld [vmem:[%s7 + $0x3c] sm:$0xf]
        %v2437 = vld [vmem:[#allocation6] sm:$0x1]
        %v2439 = vlaneseq
        %v2440 = vshrl.u32 %v2439, 7
        %v2441 = vsub.s32 0, %v2440
        %v2442 = vrot.slane %v2437, %v2441
        %v2460 = vunpack.c.l.b16 %v2421
        %v2461 = vunpack.c.l.b16 %v2422
        %v2462 = vunpack.c.l.b16 %v2423
        %v2463 = vunpack.c.l.b16 %v2424
        %v2464 = vunpack.c.l.b16 %v2425
        %v2465 = vunpack.c.l.b16 %v2426
        %v2466 = vunpack.c.l.b16 %v2427
        %v2467 = vunpack.c.l.b16 %v2428
        %v2468 = vunpack.c.l.b16 %v2429
        %v2469 = vunpack.c.l.b16 %v2430
        %v2470 = vunpack.c.l.b16 %v2431
        %v2471 = vunpack.c.l.b16 %v2432
        %v2472 = vunpack.c.l.b16 %v2433
        %v2473 = vunpack.c.l.b16 %v2434
        %v2474 = vunpack.c.l.b16 %v2435
        %v2475 = vunpack.c.l.b16 %v2436
        %v2476 = vpack.c.b16 %v2461, %v2460
        %v2477 = vpack.c.b16 %v2463, %v2462
        %v2478 = vpack.c.b16 %v2465, %v2464
        %v2479 = vpack.c.b16 %v2467, %v2466
        %v2480 = vpack.c.b16 %v2469, %v2468
        %v2481 = vpack.c.b16 %v2471, %v2470
        %v2482 = vpack.c.b16 %v2473, %v2472
        %v2483 = vpack.c.b16 %v2475, %v2474
        %2492 = vmatprep.subr.bf16.mxu0 0
        %2493 = vmatpush1.bf16.msra.mxu0 %v2483
        %2494 = vmatprep.subr.bf16.mxu0 0
        %2495 = vmatpush1.bf16.msra.mxu0 %v2482
        %2496 = vmatprep.subr.bf16.mxu0 0
        %2497 = vmatpush1.bf16.msra.mxu0 %v2481
        %2498 = vmatprep.subr.bf16.mxu0 0
        %2499 = vmatpush1.bf16.msra.mxu0 %v2480
        %2500 = vmatprep.subr.bf16.mxu0 0
        %2501 = vmatpush1.bf16.msra.mxu0 %v2479
        %2502 = vmatprep.subr.bf16.mxu0 0
        %2503 = vmatpush1.bf16.msra.mxu0 %v2478
        %2504 = vmatprep.subr.bf16.mxu0 0
        %2505 = vmatpush1.bf16.msra.mxu0 %v2477
        %2506 = vmatprep.subr.bf16.mxu0 0
        %2507 = vmatpush1.bf16.msra.mxu0 %v2476
        %2508 = vmatprep.subr.bf16.mxu0 0
        %2509 = vmatpush2.bf16.msra.mxu0 0
        %2510 = vmatprep.subr.bf16.mxu0 0
        %2511 = vmatpush2.bf16.msra.mxu0 0
        %2512 = vmatprep.subr.bf16.mxu0 0
        %2513 = vmatpush2.bf16.msra.mxu0 0
        %2514 = vmatprep.subr.bf16.mxu0 0
        %2515 = vmatpush2.bf16.msra.mxu0 0
        %2516 = vmatprep.subr.bf16.mxu0 0
        %2517 = vmatpush2.bf16.msra.mxu0 0
        %2518 = vmatprep.subr.bf16.mxu0 0
        %2519 = vmatpush2.bf16.msra.mxu0 0
        %2520 = vmatprep.subr.bf16.mxu0 0
        %2521 = vmatpush2.bf16.msra.mxu0 0
        %2522 = vmatprep.subr.bf16.mxu0 0
        %2523 = vmatpush2.bf16.msra.mxu0 0
        %2524 = vmatprep.mubr.bf16.mxu0 0
        %2525 = vmatmul.mubr.bf16.gmra.mxu0 %v2405
        %v2526 = vpop.f32.mrf.mxu0
        %v2527 = vadd.f32 %v2442, %v2526
        %v2528 = vpop.f32.mrf.mxu0
        %v2529 = vpop.f32.mrf.mxu0
        %v2530 = vadd.f32 %v2442, %v2529
        %v2531 = vpop.f32.mrf.mxu0
        %2532 = vmatprep.mubr.bf16.mxu0 0
        %2533 = vmatmul.mubr.bf16.gmra.mxu0 %v2406
        %v2534 = vpop.f32.mrf.mxu0
        %v2535 = vadd.f32 %v2442, %v2534
        %v2536 = vpop.f32.mrf.mxu0
        %v2537 = vpop.f32.mrf.mxu0
        %v2538 = vadd.f32 %v2442, %v2537
        %v2539 = vpop.f32.mrf.mxu0
        %2540 = vmatprep.mubr.bf16.mxu0 0
        %2541 = vmatmul.mubr.bf16.gmra.mxu0 %v2407
        %v2542 = vpop.f32.mrf.mxu0
        %v2543 = vadd.f32 %v2442, %v2542
        %v2544 = vpop.f32.mrf.mxu0
        %v2545 = vpop.f32.mrf.mxu0
        %v2546 = vadd.f32 %v2442, %v2545
        %v2547 = vpop.f32.mrf.mxu0
        %2548 = vmatprep.mubr.bf16.mxu0 0
        %2549 = vmatmul.mubr.bf16.gmra.mxu0 %v2408
        %v2550 = vpop.f32.mrf.mxu0
        %v2551 = vadd.f32 %v2442, %v2550
        %v2552 = vpop.f32.mrf.mxu0
        %v2553 = vpop.f32.mrf.mxu0
        %v2554 = vadd.f32 %v2442, %v2553
        %v2555 = vpop.f32.mrf.mxu0
        %2556 = vmatprep.mubr.bf16.mxu0 0
        %2557 = vmatmul.mubr.bf16.gmra.mxu0 %v2409
        %v2558 = vpop.f32.mrf.mxu0
        %v2559 = vadd.f32 %v2442, %v2558
        %v2560 = vpop.f32.mrf.mxu0
        %v2561 = vpop.f32.mrf.mxu0
        %v2562 = vadd.f32 %v2442, %v2561
        %v2563 = vpop.f32.mrf.mxu0
        %2564 = vmatprep.mubr.bf16.mxu0 0
        %2565 = vmatmul.mubr.bf16.gmra.mxu0 %v2410
        %v2566 = vpop.f32.mrf.mxu0
        %v2567 = vadd.f32 %v2442, %v2566
        %v2568 = vpop.f32.mrf.mxu0
        %v2569 = vpop.f32.mrf.mxu0
        %v2570 = vadd.f32 %v2442, %v2569
        %v2571 = vpop.f32.mrf.mxu0
        %2572 = vmatprep.mubr.bf16.mxu0 0
        %2573 = vmatmul.mubr.bf16.gmra.mxu0 %v2411
        %v2574 = vpop.f32.mrf.mxu0
        %v2575 = vadd.f32 %v2442, %v2574
        %v2576 = vpop.f32.mrf.mxu0
        %v2577 = vpop.f32.mrf.mxu0
        %v2578 = vadd.f32 %v2442, %v2577
        %v2579 = vpop.f32.mrf.mxu0
        %2580 = vmatprep.mubr.bf16.mxu0 0
        %2581 = vmatmul.mubr.bf16.gmra.mxu0 %v2412
        %v2582 = vpop.f32.mrf.mxu0
        %v2583 = vadd.f32 %v2442, %v2582
        %v2584 = vpop.f32.mrf.mxu0
        %v2585 = vpop.f32.mrf.mxu0
        %v2586 = vadd.f32 %v2442, %v2585
        %v2587 = vpop.f32.mrf.mxu0
        %2588 = vmatprep.mubr.bf16.mxu0 0
        %2589 = vmatmul.mubr.bf16.gmra.mxu0 %v2413
        %v2590 = vpop.f32.mrf.mxu0
        %v2591 = vadd.f32 %v2442, %v2590
        %v2592 = vpop.f32.mrf.mxu0
        %v2593 = vpop.f32.mrf.mxu0
        %v2594 = vadd.f32 %v2442, %v2593
        %v2595 = vpop.f32.mrf.mxu0
        %2596 = vmatprep.mubr.bf16.mxu0 0
        %2597 = vmatmul.mubr.bf16.gmra.mxu0 %v2414
        %v2598 = vpop.f32.mrf.mxu0
        %v2599 = vadd.f32 %v2442, %v2598
        %v2600 = vpop.f32.mrf.mxu0
        %v2601 = vpop.f32.mrf.mxu0
        %v2602 = vadd.f32 %v2442, %v2601
        %v2603 = vpop.f32.mrf.mxu0
        %2604 = vmatprep.mubr.bf16.mxu0 0
        %2605 = vmatmul.mubr.bf16.gmra.mxu0 %v2415
        %v2606 = vpop.f32.mrf.mxu0
        %v2607 = vadd.f32 %v2442, %v2606
        %v2608 = vpop.f32.mrf.mxu0
        %v2609 = vpop.f32.mrf.mxu0
        %v2610 = vadd.f32 %v2442, %v2609
        %v2611 = vpop.f32.mrf.mxu0
        %2612 = vmatprep.mubr.bf16.mxu0 0
        %2613 = vmatmul.mubr.bf16.gmra.mxu0 %v2416
        %v2614 = vpop.f32.mrf.mxu0
        %v2615 = vadd.f32 %v2442, %v2614
        %v2616 = vpop.f32.mrf.mxu0
        %v2617 = vpop.f32.mrf.mxu0
        %v2618 = vadd.f32 %v2442, %v2617
        %v2619 = vpop.f32.mrf.mxu0
        %2620 = vmatprep.mubr.bf16.mxu0 0
        %2621 = vmatmul.mubr.bf16.gmra.mxu0 %v2417
        %v2622 = vpop.f32.mrf.mxu0
        %v2623 = vadd.f32 %v2442, %v2622
        %v2624 = vpop.f32.mrf.mxu0
        %v2625 = vpop.f32.mrf.mxu0
        %v2626 = vadd.f32 %v2442, %v2625
        %v2627 = vpop.f32.mrf.mxu0
        %2628 = vmatprep.mubr.bf16.mxu0 0
        %2629 = vmatmul.mubr.bf16.gmra.mxu0 %v2418
        %v2630 = vpop.f32.mrf.mxu0
        %v2631 = vadd.f32 %v2442, %v2630
        %v2632 = vpop.f32.mrf.mxu0
        %v2633 = vpop.f32.mrf.mxu0
        %v2634 = vadd.f32 %v2442, %v2633
        %v2635 = vpop.f32.mrf.mxu0
        %2636 = vmatprep.mubr.bf16.mxu0 0
        %2637 = vmatmul.mubr.bf16.gmra.mxu0 %v2419
        %v2638 = vpop.f32.mrf.mxu0
        %v2639 = vadd.f32 %v2442, %v2638
        %v2640 = vpop.f32.mrf.mxu0
        %v2641 = vpop.f32.mrf.mxu0
        %v2642 = vadd.f32 %v2442, %v2641
        %v2643 = vpop.f32.mrf.mxu0
        %2644 = vmatprep.mubr.bf16.mxu0 0
        %2645 = vmatmul.mubr.bf16.gmra.mxu0 %v2420
        %v2646 = vpop.f32.mrf.mxu0
        %v2647 = vadd.f32 %v2442, %v2646
        %v2648 = vpop.f32.mrf.mxu0
        %v2649 = vpop.f32.mrf.mxu0
        %v2650 = vadd.f32 %v2442, %v2649
        %v2651 = vpop.f32.mrf.mxu0
        %2652 = vdwg.mxu0
        %v2653 = vpack.c.bf16 %v2530, %v2527
        %v2654 = vpack.c.bf16 %v2538, %v2535
        %v2655 = vpack.c.bf16 %v2546, %v2543
        %v2656 = vpack.c.bf16 %v2554, %v2551
        %v2657 = vpack.c.bf16 %v2562, %v2559
        %v2658 = vpack.c.bf16 %v2570, %v2567
        %v2659 = vpack.c.bf16 %v2578, %v2575
        %v2660 = vpack.c.bf16 %v2586, %v2583
        %v2661 = vpack.c.bf16 %v2594, %v2591
        %v2662 = vpack.c.bf16 %v2602, %v2599
        %v2663 = vpack.c.bf16 %v2610, %v2607
        %v2664 = vpack.c.bf16 %v2618, %v2615
        %v2665 = vpack.c.bf16 %v2626, %v2623
        %v2666 = vpack.c.bf16 %v2634, %v2631
        %v2667 = vpack.c.bf16 %v2642, %v2639
        %v2668 = vpack.c.bf16 %v2650, %v2647
        %v2685 = vunpack.c.l.b16 %v2653
        %v2686 = vunpack.c.h.b16 %v2653
        %v2687 = vunpack.c.l.b16 %v2654
        %v2688 = vunpack.c.h.b16 %v2654
        %v2689 = vunpack.c.l.b16 %v2655
        %v2690 = vunpack.c.h.b16 %v2655
        %v2691 = vunpack.c.l.b16 %v2656
        %v2692 = vunpack.c.h.b16 %v2656
        %v2693 = vunpack.c.l.b16 %v2657
        %v2694 = vunpack.c.h.b16 %v2657
        %v2695 = vunpack.c.l.b16 %v2658
        %v2696 = vunpack.c.h.b16 %v2658
        %v2697 = vunpack.c.l.b16 %v2659
        %v2698 = vunpack.c.h.b16 %v2659
        %v2699 = vunpack.c.l.b16 %v2660
        %v2700 = vunpack.c.h.b16 %v2660
        %v2701 = vunpack.c.l.b16 %v2661
        %v2702 = vunpack.c.h.b16 %v2661
        %v2703 = vunpack.c.l.b16 %v2662
        %v2704 = vunpack.c.h.b16 %v2662
        %v2705 = vunpack.c.l.b16 %v2663
        %v2706 = vunpack.c.h.b16 %v2663
        %v2707 = vunpack.c.l.b16 %v2664
        %v2708 = vunpack.c.h.b16 %v2664
        %v2709 = vunpack.c.l.b16 %v2665
        %v2710 = vunpack.c.h.b16 %v2665
        %v2711 = vunpack.c.l.b16 %v2666
        %v2712 = vunpack.c.h.b16 %v2666
        %v2713 = vunpack.c.l.b16 %v2667
        %v2714 = vunpack.c.h.b16 %v2667
        %v2715 = vunpack.c.l.b16 %v2668
        %v2716 = vunpack.c.h.b16 %v2668
        %v2717 = vpack.c.b16 %v2685, %v2685
        %v2718 = vpack.c.b16 %v2686, %v2686
        %v2719 = vpack.c.b16 %v2687, %v2687
        %v2720 = vpack.c.b16 %v2688, %v2688
        %v2721 = vpack.c.b16 %v2689, %v2689
        %v2722 = vpack.c.b16 %v2690, %v2690
        %v2723 = vpack.c.b16 %v2691, %v2691
        %v2724 = vpack.c.b16 %v2692, %v2692
        %v2725 = vpack.c.b16 %v2693, %v2693
        %v2726 = vpack.c.b16 %v2694, %v2694
        %v2727 = vpack.c.b16 %v2695, %v2695
        %v2728 = vpack.c.b16 %v2696, %v2696
        %v2729 = vpack.c.b16 %v2697, %v2697
        %v2730 = vpack.c.b16 %v2698, %v2698
        %v2731 = vpack.c.b16 %v2699, %v2699
        %v2732 = vpack.c.b16 %v2700, %v2700
        %v2733 = vpack.c.b16 %v2701, %v2701
        %v2734 = vpack.c.b16 %v2702, %v2702
        %v2735 = vpack.c.b16 %v2703, %v2703
        %v2736 = vpack.c.b16 %v2704, %v2704
        %v2737 = vpack.c.b16 %v2705, %v2705
        %v2738 = vpack.c.b16 %v2706, %v2706
        %v2739 = vpack.c.b16 %v2707, %v2707
        %v2740 = vpack.c.b16 %v2708, %v2708
        %v2741 = vpack.c.b16 %v2709, %v2709
        %v2742 = vpack.c.b16 %v2710, %v2710
        %v2743 = vpack.c.b16 %v2711, %v2711
        %v2744 = vpack.c.b16 %v2712, %v2712
        %v2745 = vpack.c.b16 %v2713, %v2713
        %v2746 = vpack.c.b16 %v2714, %v2714
        %v2747 = vpack.c.b16 %v2715, %v2715
        %v2748 = vpack.c.b16 %v2716, %v2716
        %2781 = vst [vmem:[%s372] sm:$0xf] %v2717
        %2782 = vst [vmem:[%s372 + $0x4] sm:$0xf] %v2718
        %2783 = vst [vmem:[%s372 + $0x8] sm:$0xf] %v2719
        %2784 = vst [vmem:[%s372 + $0xc] sm:$0xf] %v2720
        %2785 = vst [vmem:[%s372 + $0x10] sm:$0xf] %v2721
        %2786 = vst [vmem:[%s372 + $0x14] sm:$0xf] %v2722
        %2787 = vst [vmem:[%s372 + $0x18] sm:$0xf] %v2723
        %2788 = vst [vmem:[%s372 + $0x1c] sm:$0xf] %v2724
        %2789 = vst [vmem:[%s372 + $0x20] sm:$0xf] %v2725
        %2790 = vst [vmem:[%s372 + $0x24] sm:$0xf] %v2726
        %2791 = vst [vmem:[%s372 + $0x28] sm:$0xf] %v2727
        %2792 = vst [vmem:[%s372 + $0x2c] sm:$0xf] %v2728
        %2793 = vst [vmem:[%s372 + $0x30] sm:$0xf] %v2729
        %2794 = vst [vmem:[%s372 + $0x34] sm:$0xf] %v2730
        %2795 = vst [vmem:[%s372 + $0x38] sm:$0xf] %v2731
        %2796 = vst [vmem:[%s372 + $0x3c] sm:$0xf] %v2732
        %2797 = vst [vmem:[%s372 + $0x40] sm:$0xf] %v2733
        %2798 = vst [vmem:[%s372 + $0x44] sm:$0xf] %v2734
        %2799 = vst [vmem:[%s372 + $0x48] sm:$0xf] %v2735
        %2800 = vst [vmem:[%s372 + $0x4c] sm:$0xf] %v2736
        %2801 = vst [vmem:[%s372 + $0x50] sm:$0xf] %v2737
        %2802 = vst [vmem:[%s372 + $0x54] sm:$0xf] %v2738
        %2803 = vst [vmem:[%s372 + $0x58] sm:$0xf] %v2739
        %2804 = vst [vmem:[%s372 + $0x5c] sm:$0xf] %v2740
        %2805 = vst [vmem:[%s372 + $0x60] sm:$0xf] %v2741
        %2806 = vst [vmem:[%s372 + $0x64] sm:$0xf] %v2742
        %2807 = vst [vmem:[%s372 + $0x68] sm:$0xf] %v2743
        %2808 = vst [vmem:[%s372 + $0x6c] sm:$0xf] %v2744
        %2809 = vst [vmem:[%s372 + $0x70] sm:$0xf] %v2745
        %2810 = vst [vmem:[%s372 + $0x74] sm:$0xf] %v2746
        %2811 = vst [vmem:[%s372 + $0x78] sm:$0xf] %v2747
        %2812 = vst [vmem:[%s372 + $0x7c] sm:$0xf] %v2748
        %s2813 = smul.u32 32, %s22
        %p2814 = scmp.lt.s32.totalorder %s2813, 63
        %s2815 = scalar_select %p2814, %s2813, 63
        %s2816 = smul.addr %s2815, 4
        %s2817 = scalar_lea.vmem %s9, %s2816
        // Predicated region
        $region69: #{dqn_forward.1} parent=55 // pred_check
          %p2818 = pneg %p234
        $region70: #{dqn_forward.1} parent=55 // pred_check_branch
          %2820 = sbr.rel (%p2818) target = $region72
        $region71: #{dqn_forward.1} parent=55 // pred_region
          %s2821 = smul.u32 32, %s22
        $region72: #{dqn_forward.1} parent=55 // pred_fallthru
          _
      $region56: #{dqn_forward.1} parent=5 // pred_fallthru
        _
      %p2822 = scmp.le.s32.totalorder 2, %s17
      // Predicated region
      $region73: #{dqn_forward.1} parent=5 // pred_check
        %p2823 = pneg %p2822
      $region74: #{dqn_forward.1} parent=5 // pred_check_branch
        %2825 = sbr.rel (%p2823) target = $region76
      $region75: #{dqn_forward.1} parent=5 // pred_region
        %s2826 = ssub.s32 %s17, 2
        // Predicated region
        $region77: #{dqn_forward.1} parent=75 // pred_check
          %p2827 = pneg %p240
        $region78: #{dqn_forward.1} parent=75 // pred_check_branch
          %2829 = sbr.rel (%p2827) target = $region80
        $region79: #{dqn_forward.1} parent=75 // pred_region
          %s2830 = smul.u32 32, %s23
          %p2831 = scmp.lt.s32.totalorder %s2830, 63
          %s2832 = scalar_select %p2831, %s2830, 63
          %s2833 = smul.addr %s2832, 4
          %s2834 = scalar_lea.vmem %s9, %s2833
        $region80: #{dqn_forward.1} parent=75 // pred_fallthru
          _
      $region76: #{dqn_forward.1} parent=5 // pred_fallthru
        _
    $region6: #{dqn_forward.1} parent=1 // loop_footer
      %s21 = sadd.s32 1, %s17
    $region7: #{dqn_forward.1} parent=1 // loop_footer_branch
      %16 = sbr.rel target = $region3
    $region8: #{dqn_forward.1} parent=1 // loop_exit
      _
    %2835 = vsyncpa [#allocation3], 1
    %s2836 = scalar_lea.sflag [#allocation3], 1
    %2837 = vsyncpa %s2836, 1
    %2838 = vsyncpa [#allocation5], 1

</llo_original>
